<compile_context>
chip_gen: v7x
topology: tpu7x:2x2x1
jax: 0.10.0
libtpu: 0.0.40
codegen_flags: <defaults>
</compile_context>

<pallas_src>
import functools

import jax
import jax.numpy as jnp
import numpy as np
from jax import lax
from jax.experimental import pallas as pl
from jax.experimental.pallas import tpu as pltpu

INPUT_DIM = 62
HIDDEN_DIM = 12
NUM_LAYERS = 1  # dropout with num_layers=1 is a no-op in the PyTorch module


def _round_up(x, m):
    return ((x + m - 1) // m) * m


def _lstm_last_kernel(x_ref, wih_ref, whh_ref, b_ref, out_ref, xg_ref, *,
                      seq_len, gp):
    """LSTM recurrence over one batch tile; writes the last hidden state.

    x_ref:   [T, Btile, DP]      time-major, zero-padded input block
    wih_ref: [DP, 4*GP]          W_ih^T with each gate padded to a 128-lane slab
    whh_ref: [GP, 4*GP]          W_hh^T padded the same way
    b_ref:   [1, 4*GP]           b_ih + b_hh, padded
    out_ref: [Btile, GP]         lane-dense padded last hidden state
    xg_ref:  [T, Btile, 4*GP]    VMEM scratch: precomputed input gates
    Gate order matches PyTorch nn.LSTM: (i, f, g, o).
    """
    GP = gp
    T = seq_len
    bt = x_ref.shape[1]
    dp = x_ref.shape[2]

    # (1) Input projection hoisted out of the recurrence: one big matmul over
    #     all timesteps with the bias broadcast folded in exactly once.
    x2d = x_ref[...].reshape(T * bt, dp)                                 # [T*bt, DP]
    xg = jnp.dot(x2d, wih_ref[...], preferred_element_type=jnp.float32)
    xg = xg + b_ref[...]                                                 # one broadcast
    xg_ref[...] = xg.reshape(T, bt, 4 * GP)                              # time-major

    h0 = jnp.zeros((bt, GP), jnp.float32)
    c0 = jnp.zeros((bt, GP), jnp.float32)

    def step(t, carry):
        h, c = carry
        # Only the small recurrent matmul + VPU/EUP work is on the serial path.
        gates = xg_ref[t] + jnp.dot(h, whh_ref[...],
                                    preferred_element_type=jnp.float32)
        # 128-aligned lane slices (one slab per gate) -> no cross-lane selects.
        i_g = jax.nn.sigmoid(gates[:, 0 * GP:1 * GP])
        f_g = jax.nn.sigmoid(gates[:, 1 * GP:2 * GP])
        g_g = jnp.tanh(gates[:, 2 * GP:3 * GP])
        o_g = jax.nn.sigmoid(gates[:, 3 * GP:4 * GP])
        c_new = f_g * c + i_g * g_g
        h_new = o_g * jnp.tanh(c_new)
        return (h_new, c_new)

    unroll = seq_len if seq_len <= 8 else 8
    h_last, _ = lax.fori_loop(0, seq_len, step, (h0, c0), unroll=unroll)

    out_ref[...] = h_last  # lane-dense [Btile, 128] store


def deep_svdd_forward(x, w_ih, w_hh, b_ih, b_hh, *, block_b=256):
    """Pallas-backed forward of DeepSVDD (LSTM last hidden state).

    x:     [B, T, D]   float32
    w_ih:  [4H, D]     (PyTorch nn.LSTM weight_ih_l0, gate order i,f,g,o)
    w_hh:  [4H, H]     (PyTorch nn.LSTM weight_hh_l0)
    b_ih:  [4H]
    b_hh:  [4H]
    returns [B, H] float32 (last-timestep hidden state).
    """
    B, T, D = x.shape
    H = w_hh.shape[1]
    GP = 128                        # per-gate padded lane width
    DP = _round_up(D, 128)          # lane-aligned input feature dim

    f32 = jnp.float32

    # ---- batch tiling: multiple of 8 sublanes, gate scratch kept modest ----
    bt = min(block_b, _round_up(B, 8))
    scratch_cap = 8 * 1024 * 1024   # bytes allowed for per-tile gate scratch
    max_bt = max(8, (scratch_cap // (T * 4 * GP * 4)) // 8 * 8)
    bt = max(8, min(bt, max_bt))
    Bpad = _round_up(B, bt)
    nb = Bpad // bt

    # ---- time-major, zero-padded input: [T, Bpad, DP] ----
    x_tm = jnp.transpose(x.astype(f32), (1, 0, 2))
    x_tm = jnp.pad(x_tm, ((0, 0), (0, Bpad - B), (0, DP - D)))

    # ---- weights with each gate in its own 128-lane slab (zero padded) ----
    wih_g = jnp.transpose(w_ih.astype(f32)).reshape(D, 4, H)             # [D, 4, H]
    wih_p = jnp.pad(wih_g, ((0, DP - D), (0, 0), (0, GP - H))).reshape(DP, 4 * GP)

    whh_g = jnp.transpose(w_hh.astype(f32)).reshape(H, 4, H)             # [H, 4, H]
    whh_p = jnp.pad(whh_g, ((0, GP - H), (0, 0), (0, GP - H))).reshape(GP, 4 * GP)

    bias = (b_ih + b_hh).astype(f32).reshape(4, H)
    bias_p = jnp.pad(bias, ((0, 0), (0, GP - H))).reshape(1, 4 * GP)

    kernel = functools.partial(_lstm_last_kernel, seq_len=T, gp=GP)

    out_pad = pl.pallas_call(
        kernel,
        out_shape=jax.ShapeDtypeStruct((Bpad, GP), f32),
        grid_spec=pltpu.PrefetchScalarGridSpec(
            num_scalar_prefetch=0,
            grid=(nb,),
            in_specs=[
                pl.BlockSpec((T, bt, DP), lambda b: (0, b, 0)),    # x (time-major)
                pl.BlockSpec((DP, 4 * GP), lambda b: (0, 0)),      # W_ih^T padded
                pl.BlockSpec((GP, 4 * GP), lambda b: (0, 0)),      # W_hh^T padded
                pl.BlockSpec((1, 4 * GP), lambda b: (0, 0)),       # bias padded
            ],
            out_specs=pl.BlockSpec((bt, GP), lambda b: (b, 0)),    # padded last-h
            scratch_shapes=[pltpu.VMEM((T, bt, 4 * GP), f32)],     # precomputed gates
        ),
        compiler_params=pltpu.CompilerParams(
            dimension_semantics=("parallel",),
            vmem_limit_bytes=32 * 1024 * 1024,
        ),
    )(x_tm, wih_p, whh_p, bias_p)

    return out_pad[:B, :H]


def _reference_forward(x, w_ih, w_hh, b_ih, b_hh):
    """Pure-JAX reference (same semantics as PyTorch nn.LSTM, batch_first)."""
    H = w_hh.shape[1]
    wih_t = w_ih.T
    whh_t = w_hh.T
    b = b_ih + b_hh

    def step(carry, x_t):
        h, c = carry
        gates = x_t @ wih_t + h @ whh_t + b
        i_g = jax.nn.sigmoid(gates[:, 0 * H:1 * H])
        f_g = jax.nn.sigmoid(gates[:, 1 * H:2 * H])
        g_g = jnp.tanh(gates[:, 2 * H:3 * H])
        o_g = jax.nn.sigmoid(gates[:, 3 * H:4 * H])
        c_new = f_g * c + i_g * g_g
        h_new = o_g * jnp.tanh(c_new)
        return (h_new, c_new), None

    B = x.shape[0]
    h0 = jnp.zeros((B, H), jnp.float32)
    c0 = jnp.zeros((B, H), jnp.float32)
    (h_last, _), _ = lax.scan(step, (h0, c0), jnp.swapaxes(x, 0, 1))
    return h_last


if __name__ == "__main__":
    # Small example consistent with the module: [batch, seq_len, input_dim]
    B, T, D, H = 2, 8, INPUT_DIM, HIDDEN_DIM

    key = jax.random.PRNGKey(0)
    k_x, k_wih, k_whh, k_bih, k_bhh = jax.random.split(key, 5)

    # Deterministic init matching PyTorch nn.LSTM's U(-1/sqrt(H), 1/sqrt(H))
    bound = 1.0 / np.sqrt(H)
    x = jax.random.normal(k_x, (B, T, D), dtype=jnp.float32)
    w_ih = jax.random.uniform(k_wih, (4 * H, D), minval=-bound, maxval=bound, dtype=jnp.float32)
    w_hh = jax.random.uniform(k_whh, (4 * H, H), minval=-bound, maxval=bound, dtype=jnp.float32)
    b_ih = jax.random.uniform(k_bih, (4 * H,), minval=-bound, maxval=bound, dtype=jnp.float32)
    b_hh = jax.random.uniform(k_bhh, (4 * H,), minval=-bound, maxval=bound, dtype=jnp.float32)

    out = deep_svdd_forward(x, w_ih, w_hh, b_ih, b_hh)
    out = jax.block_until_ready(out)

    ref = jax.block_until_ready(_reference_forward(x, w_ih, w_hh, b_ih, b_hh))
    assert out.shape == (B, H)
    np.testing.assert_allclose(np.asarray(out), np.asarray(ref), rtol=1e-5, atol=1e-5)

    # TODO(synk): projection/R/c of DeepSVDD are not used in forward() and are
    # therefore not part of the kernel (matches the PyTorch forward exactly).
    print("KERNEL_OK")
</pallas_src>

<mosaic_0001>
module attributes {stable_mosaic.version = 11 : i64} {
  func.func @_lstm_last_kernel(%arg0: i32, %arg1: memref<8x8x128xf32, #tpu.memory_space<vmem>>, %arg2: memref<128x512xf32, #tpu.memory_space<vmem>>, %arg3: memref<128x512xf32, #tpu.memory_space<vmem>>, %arg4: memref<1x512xf32, #tpu.memory_space<vmem>>, %arg5: memref<8x128xf32, #tpu.memory_space<vmem>>, %arg6: memref<8x8x512xf32, #tpu.memory_space<vmem>>) attributes {dimension_semantics = [#tpu.dimension_semantics<parallel>], iteration_bounds = array<i64: 1>, scalar_prefetch = 0 : i64, scratch_operands = 1 : i64, tpu.core_type = #tpu.core_type<tc>, window_params = [{transform_indices = @transform_0, window_bounds = array<i64: 8, 8, 128>}, {pipeline_mode = #tpu.pipeline_mode<synchronous>, transform_indices = @transform_1, window_bounds = array<i64: 128, 512>}, {pipeline_mode = #tpu.pipeline_mode<synchronous>, transform_indices = @transform_2, window_bounds = array<i64: 128, 512>}, {pipeline_mode = #tpu.pipeline_mode<synchronous>, transform_indices = @transform_3, window_bounds = array<i64: 1, 512>}, {transform_indices = @transform_4, window_bounds = array<i64: 8, 128>}]} {
    %c0 = arith.constant 0 : index
    %c0_0 = arith.constant 0 : index
    %c0_1 = arith.constant 0 : index
    %0 = vector.load %arg1[%c0, %c0_0, %c0_1] : memref<8x8x128xf32, #tpu.memory_space<vmem>>, vector<8x8x128xf32>
    %1 = vector.shape_cast %0 : vector<8x8x128xf32> to vector<64x128xf32>
    %c0_2 = arith.constant 0 : index
    %c0_3 = arith.constant 0 : index
    %2 = vector.load %arg2[%c0_2, %c0_3] : memref<128x512xf32, #tpu.memory_space<vmem>>, vector<128x512xf32>
    %cst = arith.constant dense<0.000000e+00> : vector<64x512xf32>
    %3 = tpu.matmul %1, %2, %cst {dimension_numbers = #tpu.dot_dimension_numbers<[1], [0], [0], [1], [0, 0, 1, 1], [], []>} : vector<64x128xf32>, vector<128x512xf32>, vector<64x512xf32> -> vector<64x512xf32>
    %c0_4 = arith.constant 0 : index
    %c0_5 = arith.constant 0 : index
    %4 = vector.load %arg4[%c0_4, %c0_5] : memref<1x512xf32, #tpu.memory_space<vmem>>, vector<1x512xf32>
    %5 = vector.broadcast %4 : vector<1x512xf32> to vector<64x512xf32>
    %6 = arith.addf %3, %5 : vector<64x512xf32>
    %7 = vector.shape_cast %6 : vector<64x512xf32> to vector<8x8x512xf32>
    %c0_6 = arith.constant 0 : index
    %c0_7 = arith.constant 0 : index
    %c0_8 = arith.constant 0 : index
    %8 = vector.load %arg6[%c0_6, %c0_7, %c0_8] : memref<8x8x512xf32, #tpu.memory_space<vmem>>, vector<8x8x512xf32>
    tpu.vector_store %arg6[%c0_6, %c0_7, %c0_8], %7 {strides = array<i32>} : memref<8x8x512xf32, #tpu.memory_space<vmem>>, vector<8x8x512xf32>,
    %cst_9 = arith.constant 0.000000e+00 : f32
    %9 = vector.broadcast %cst_9 : f32 to vector<8x128xf32>
    %cst_10 = arith.constant 0.000000e+00 : f32
    %10 = vector.broadcast %cst_10 : f32 to vector<8x128xf32>
    %c0_i32 = arith.constant 0 : i32
    %11 = arith.index_cast %c0_i32 : i32 to index
    %c0_11 = arith.constant 0 : index
    %c0_12 = arith.constant 0 : index
    %12 = vector.load %arg6[%11, %c0_11, %c0_12] : memref<8x8x512xf32, #tpu.memory_space<vmem>>, vector<1x8x512xf32>
    %13 = vector.shape_cast %12 : vector<1x8x512xf32> to vector<8x512xf32>
    %c0_13 = arith.constant 0 : index
    %c0_14 = arith.constant 0 : index
    %14 = vector.load %arg3[%c0_13, %c0_14] : memref<128x512xf32, #tpu.memory_space<vmem>>, vector<128x512xf32>
    %cst_15 = arith.constant dense<0.000000e+00> : vector<8x512xf32>
    %15 = tpu.matmul %9, %14, %cst_15 {dimension_numbers = #tpu.dot_dimension_numbers<[1], [0], [0], [1], [0, 0, 1, 1], [], []>} : vector<8x128xf32>, vector<128x512xf32>, vector<8x512xf32> -> vector<8x512xf32>
    %16 = arith.addf %13, %15 : vector<8x512xf32>
    %17 = vector.extract_strided_slice %16 {offsets = [0, 0], sizes = [8, 128], strides = [1, 1]} : vector<8x512xf32> to vector<8x128xf32>
    %18 = arith.negf %17 : vector<8x128xf32>
    %19 = math.exp %18 : vector<8x128xf32>
    %cst_16 = arith.constant 1.000000e+00 : f32
    %20 = vector.broadcast %cst_16 : f32 to vector<8x128xf32>
    %21 = arith.addf %20, %19 : vector<8x128xf32>
    %22 = arith.divf %20, %21 : vector<8x128xf32>
    %23 = vector.extract_strided_slice %16 {offsets = [0, 128], sizes = [8, 128], strides = [1, 1]} : vector<8x512xf32> to vector<8x128xf32>
    %24 = arith.negf %23 : vector<8x128xf32>
    %25 = math.exp %24 : vector<8x128xf32>
    %cst_17 = arith.constant 1.000000e+00 : f32
    %26 = vector.broadcast %cst_17 : f32 to vector<8x128xf32>
    %27 = arith.addf %26, %25 : vector<8x128xf32>
    %28 = arith.divf %26, %27 : vector<8x128xf32>
    %29 = vector.extract_strided_slice %16 {offsets = [0, 256], sizes = [8, 128], strides = [1, 1]} : vector<8x512xf32> to vector<8x128xf32>
    %30 = math.tanh %29 : vector<8x128xf32>
    %31 = vector.extract_strided_slice %16 {offsets = [0, 384], sizes = [8, 128], strides = [1, 1]} : vector<8x512xf32> to vector<8x128xf32>
    %32 = arith.negf %31 : vector<8x128xf32>
    %33 = math.exp %32 : vector<8x128xf32>
    %cst_18 = arith.constant 1.000000e+00 : f32
    %34 = vector.broadcast %cst_18 : f32 to vector<8x128xf32>
    %35 = arith.addf %34, %33 : vector<8x128xf32>
    %36 = arith.divf %34, %35 : vector<8x128xf32>
    %37 = arith.mulf %28, %10 : vector<8x128xf32>
    %38 = arith.mulf %22, %30 : vector<8x128xf32>
    %39 = arith.addf %37, %38 : vector<8x128xf32>
    %40 = math.tanh %39 : vector<8x128xf32>
    %41 = arith.mulf %36, %40 : vector<8x128xf32>
    %c1_i32 = arith.constant 1 : i32
    %42 = arith.index_cast %c1_i32 : i32 to index
    %c0_19 = arith.constant 0 : index
    %c0_20 = arith.constant 0 : index
    %43 = vector.load %arg6[%42, %c0_19, %c0_20] : memref<8x8x512xf32, #tpu.memory_space<vmem>>, vector<1x8x512xf32>
    %44 = vector.shape_cast %43 : vector<1x8x512xf32> to vector<8x512xf32>
    %c0_21 = arith.constant 0 : index
    %c0_22 = arith.constant 0 : index
    %45 = vector.load %arg3[%c0_21, %c0_22] : memref<128x512xf32, #tpu.memory_space<vmem>>, vector<128x512xf32>
    %cst_23 = arith.constant dense<0.000000e+00> : vector<8x512xf32>
    %46 = tpu.matmul %41, %45, %cst_23 {dimension_numbers = #tpu.dot_dimension_numbers<[1], [0], [0], [1], [0, 0, 1, 1], [], []>} : vector<8x128xf32>, vector<128x512xf32>, vector<8x512xf32> -> vector<8x512xf32>
    %47 = arith.addf %44, %46 : vector<8x512xf32>
    %48 = vector.extract_strided_slice %47 {offsets = [0, 0], sizes = [8, 128], strides = [1, 1]} : vector<8x512xf32> to vector<8x128xf32>
    %49 = arith.negf %48 : vector<8x128xf32>
    %50 = math.exp %49 : vector<8x128xf32>
    %cst_24 = arith.constant 1.000000e+00 : f32
    %51 = vector.broadcast %cst_24 : f32 to vector<8x128xf32>
    %52 = arith.addf %51, %50 : vector<8x128xf32>
    %53 = arith.divf %51, %52 : vector<8x128xf32>
    %54 = vector.extract_strided_slice %47 {offsets = [0, 128], sizes = [8, 128], strides = [1, 1]} : vector<8x512xf32> to vector<8x128xf32>
    %55 = arith.negf %54 : vector<8x128xf32>
    %56 = math.exp %55 : vector<8x128xf32>
    %cst_25 = arith.constant 1.000000e+00 : f32
    %57 = vector.broadcast %cst_25 : f32 to vector<8x128xf32>
    %58 = arith.addf %57, %56 : vector<8x128xf32>
    %59 = arith.divf %57, %58 : vector<8x128xf32>
    %60 = vector.extract_strided_slice %47 {offsets = [0, 256], sizes = [8, 128], strides = [1, 1]} : vector<8x512xf32> to vector<8x128xf32>
    %61 = math.tanh %60 : vector<8x128xf32>
    %62 = vector.extract_strided_slice %47 {offsets = [0, 384], sizes = [8, 128], strides = [1, 1]} : vector<8x512xf32> to vector<8x128xf32>
    %63 = arith.negf %62 : vector<8x128xf32>
    %64 = math.exp %63 : vector<8x128xf32>
    %cst_26 = arith.constant 1.000000e+00 : f32
    %65 = vector.broadcast %cst_26 : f32 to vector<8x128xf32>
    %66 = arith.addf %65, %64 : vector<8x128xf32>
    %67 = arith.divf %65, %66 : vector<8x128xf32>
    %68 = arith.mulf %59, %39 : vector<8x128xf32>
    %69 = arith.mulf %53, %61 : vector<8x128xf32>
    %70 = arith.addf %68, %69 : vector<8x128xf32>
    %71 = math.tanh %70 : vector<8x128xf32>
    %72 = arith.mulf %67, %71 : vector<8x128xf32>
    %c2_i32 = arith.constant 2 : i32
    %73 = arith.index_cast %c2_i32 : i32 to index
    %c0_27 = arith.constant 0 : index
    %c0_28 = arith.constant 0 : index
    %74 = vector.load %arg6[%73, %c0_27, %c0_28] : memref<8x8x512xf32, #tpu.memory_space<vmem>>, vector<1x8x512xf32>
    %75 = vector.shape_cast %74 : vector<1x8x512xf32> to vector<8x512xf32>
    %c0_29 = arith.constant 0 : index
    %c0_30 = arith.constant 0 : index
    %76 = vector.load %arg3[%c0_29, %c0_30] : memref<128x512xf32, #tpu.memory_space<vmem>>, vector<128x512xf32>
    %cst_31 = arith.constant dense<0.000000e+00> : vector<8x512xf32>
    %77 = tpu.matmul %72, %76, %cst_31 {dimension_numbers = #tpu.dot_dimension_numbers<[1], [0], [0], [1], [0, 0, 1, 1], [], []>} : vector<8x128xf32>, vector<128x512xf32>, vector<8x512xf32> -> vector<8x512xf32>
    %78 = arith.addf %75, %77 : vector<8x512xf32>
    %79 = vector.extract_strided_slice %78 {offsets = [0, 0], sizes = [8, 128], strides = [1, 1]} : vector<8x512xf32> to vector<8x128xf32>
    %80 = arith.negf %79 : vector<8x128xf32>
    %81 = math.exp %80 : vector<8x128xf32>
    %cst_32 = arith.constant 1.000000e+00 : f32
    %82 = vector.broadcast %cst_32 : f32 to vector<8x128xf32>
    %83 = arith.addf %82, %81 : vector<8x128xf32>
    %84 = arith.divf %82, %83 : vector<8x128xf32>
    %85 = vector.extract_strided_slice %78 {offsets = [0, 128], sizes = [8, 128], strides = [1, 1]} : vector<8x512xf32> to vector<8x128xf32>
    %86 = arith.negf %85 : vector<8x128xf32>
    %87 = math.exp %86 : vector<8x128xf32>
    %cst_33 = arith.constant 1.000000e+00 : f32
    %88 = vector.broadcast %cst_33 : f32 to vector<8x128xf32>
    %89 = arith.addf %88, %87 : vector<8x128xf32>
    %90 = arith.divf %88, %89 : vector<8x128xf32>
    %91 = vector.extract_strided_slice %78 {offsets = [0, 256], sizes = [8, 128], strides = [1, 1]} : vector<8x512xf32> to vector<8x128xf32>
    %92 = math.tanh %91 : vector<8x128xf32>
    %93 = vector.extract_strided_slice %78 {offsets = [0, 384], sizes = [8, 128], strides = [1, 1]} : vector<8x512xf32> to vector<8x128xf32>
    %94 = arith.negf %93 : vector<8x128xf32>
    %95 = math.exp %94 : vector<8x128xf32>
    %cst_34 = arith.constant 1.000000e+00 : f32
    %96 = vector.broadcast %cst_34 : f32 to vector<8x128xf32>
    %97 = arith.addf %96, %95 : vector<8x128xf32>
    %98 = arith.divf %96, %97 : vector<8x128xf32>
    %99 = arith.mulf %90, %70 : vector<8x128xf32>
    %100 = arith.mulf %84, %92 : vector<8x128xf32>
    %101 = arith.addf %99, %100 : vector<8x128xf32>
    %102 = math.tanh %101 : vector<8x128xf32>
    %103 = arith.mulf %98, %102 : vector<8x128xf32>
    %c3_i32 = arith.constant 3 : i32
    %104 = arith.index_cast %c3_i32 : i32 to index
    %c0_35 = arith.constant 0 : index
    %c0_36 = arith.constant 0 : index
    %105 = vector.load %arg6[%104, %c0_35, %c0_36] : memref<8x8x512xf32, #tpu.memory_space<vmem>>, vector<1x8x512xf32>
    %106 = vector.shape_cast %105 : vector<1x8x512xf32> to vector<8x512xf32>
    %c0_37 = arith.constant 0 : index
    %c0_38 = arith.constant 0 : index
    %107 = vector.load %arg3[%c0_37, %c0_38] : memref<128x512xf32, #tpu.memory_space<vmem>>, vector<128x512xf32>
    %cst_39 = arith.constant dense<0.000000e+00> : vector<8x512xf32>
    %108 = tpu.matmul %103, %107, %cst_39 {dimension_numbers = #tpu.dot_dimension_numbers<[1], [0], [0], [1], [0, 0, 1, 1], [], []>} : vector<8x128xf32>, vector<128x512xf32>, vector<8x512xf32> -> vector<8x512xf32>
    %109 = arith.addf %106, %108 : vector<8x512xf32>
    %110 = vector.extract_strided_slice %109 {offsets = [0, 0], sizes = [8, 128], strides = [1, 1]} : vector<8x512xf32> to vector<8x128xf32>
    %111 = arith.negf %110 : vector<8x128xf32>
    %112 = math.exp %111 : vector<8x128xf32>
    %cst_40 = arith.constant 1.000000e+00 : f32
    %113 = vector.broadcast %cst_40 : f32 to vector<8x128xf32>
    %114 = arith.addf %113, %112 : vector<8x128xf32>
    %115 = arith.divf %113, %114 : vector<8x128xf32>
    %116 = vector.extract_strided_slice %109 {offsets = [0, 128], sizes = [8, 128], strides = [1, 1]} : vector<8x512xf32> to vector<8x128xf32>
    %117 = arith.negf %116 : vector<8x128xf32>
    %118 = math.exp %117 : vector<8x128xf32>
    %cst_41 = arith.constant 1.000000e+00 : f32
    %119 = vector.broadcast %cst_41 : f32 to vector<8x128xf32>
    %120 = arith.addf %119, %118 : vector<8x128xf32>
    %121 = arith.divf %119, %120 : vector<8x128xf32>
    %122 = vector.extract_strided_slice %109 {offsets = [0, 256], sizes = [8, 128], strides = [1, 1]} : vector<8x512xf32> to vector<8x128xf32>
    %123 = math.tanh %122 : vector<8x128xf32>
    %124 = vector.extract_strided_slice %109 {offsets = [0, 384], sizes = [8, 128], strides = [1, 1]} : vector<8x512xf32> to vector<8x128xf32>
    %125 = arith.negf %124 : vector<8x128xf32>
    %126 = math.exp %125 : vector<8x128xf32>
    %cst_42 = arith.constant 1.000000e+00 : f32
    %127 = vector.broadcast %cst_42 : f32 to vector<8x128xf32>
    %128 = arith.addf %127, %126 : vector<8x128xf32>
    %129 = arith.divf %127, %128 : vector<8x128xf32>
    %130 = arith.mulf %121, %101 : vector<8x128xf32>
    %131 = arith.mulf %115, %123 : vector<8x128xf32>
    %132 = arith.addf %130, %131 : vector<8x128xf32>
    %133 = math.tanh %132 : vector<8x128xf32>
    %134 = arith.mulf %129, %133 : vector<8x128xf32>
    %c4_i32 = arith.constant 4 : i32
    %135 = arith.index_cast %c4_i32 : i32 to index
    %c0_43 = arith.constant 0 : index
    %c0_44 = arith.constant 0 : index
    %136 = vector.load %arg6[%135, %c0_43, %c0_44] : memref<8x8x512xf32, #tpu.memory_space<vmem>>, vector<1x8x512xf32>
    %137 = vector.shape_cast %136 : vector<1x8x512xf32> to vector<8x512xf32>
    %c0_45 = arith.constant 0 : index
    %c0_46 = arith.constant 0 : index
    %138 = vector.load %arg3[%c0_45, %c0_46] : memref<128x512xf32, #tpu.memory_space<vmem>>, vector<128x512xf32>
    %cst_47 = arith.constant dense<0.000000e+00> : vector<8x512xf32>
    %139 = tpu.matmul %134, %138, %cst_47 {dimension_numbers = #tpu.dot_dimension_numbers<[1], [0], [0], [1], [0, 0, 1, 1], [], []>} : vector<8x128xf32>, vector<128x512xf32>, vector<8x512xf32> -> vector<8x512xf32>
    %140 = arith.addf %137, %139 : vector<8x512xf32>
    %141 = vector.extract_strided_slice %140 {offsets = [0, 0], sizes = [8, 128], strides = [1, 1]} : vector<8x512xf32> to vector<8x128xf32>
    %142 = arith.negf %141 : vector<8x128xf32>
    %143 = math.exp %142 : vector<8x128xf32>
    %cst_48 = arith.constant 1.000000e+00 : f32
    %144 = vector.broadcast %cst_48 : f32 to vector<8x128xf32>
    %145 = arith.addf %144, %143 : vector<8x128xf32>
    %146 = arith.divf %144, %145 : vector<8x128xf32>
    %147 = vector.extract_strided_slice %140 {offsets = [0, 128], sizes = [8, 128], strides = [1, 1]} : vector<8x512xf32> to vector<8x128xf32>
    %148 = arith.negf %147 : vector<8x128xf32>
    %149 = math.exp %148 : vector<8x128xf32>
    %cst_49 = arith.constant 1.000000e+00 : f32
    %150 = vector.broadcast %cst_49 : f32 to vector<8x128xf32>
    %151 = arith.addf %150, %149 : vector<8x128xf32>
    %152 = arith.divf %150, %151 : vector<8x128xf32>
    %153 = vector.extract_strided_slice %140 {offsets = [0, 256], sizes = [8, 128], strides = [1, 1]} : vector<8x512xf32> to vector<8x128xf32>
    %154 = math.tanh %153 : vector<8x128xf32>
    %155 = vector.extract_strided_slice %140 {offsets = [0, 384], sizes = [8, 128], strides = [1, 1]} : vector<8x512xf32> to vector<8x128xf32>
    %156 = arith.negf %155 : vector<8x128xf32>
    %157 = math.exp %156 : vector<8x128xf32>
    %cst_50 = arith.constant 1.000000e+00 : f32
    %158 = vector.broadcast %cst_50 : f32 to vector<8x128xf32>
    %159 = arith.addf %158, %157 : vector<8x128xf32>
    %160 = arith.divf %158, %159 : vector<8x128xf32>
    %161 = arith.mulf %152, %132 : vector<8x128xf32>
    %162 = arith.mulf %146, %154 : vector<8x128xf32>
    %163 = arith.addf %161, %162 : vector<8x128xf32>
    %164 = math.tanh %163 : vector<8x128xf32>
    %165 = arith.mulf %160, %164 : vector<8x128xf32>
    %c5_i32 = arith.constant 5 : i32
    %166 = arith.index_cast %c5_i32 : i32 to index
    %c0_51 = arith.constant 0 : index
    %c0_52 = arith.constant 0 : index
    %167 = vector.load %arg6[%166, %c0_51, %c0_52] : memref<8x8x512xf32, #tpu.memory_space<vmem>>, vector<1x8x512xf32>
    %168 = vector.shape_cast %167 : vector<1x8x512xf32> to vector<8x512xf32>
    %c0_53 = arith.constant 0 : index
    %c0_54 = arith.constant 0 : index
    %169 = vector.load %arg3[%c0_53, %c0_54] : memref<128x512xf32, #tpu.memory_space<vmem>>, vector<128x512xf32>
    %cst_55 = arith.constant dense<0.000000e+00> : vector<8x512xf32>
    %170 = tpu.matmul %165, %169, %cst_55 {dimension_numbers = #tpu.dot_dimension_numbers<[1], [0], [0], [1], [0, 0, 1, 1], [], []>} : vector<8x128xf32>, vector<128x512xf32>, vector<8x512xf32> -> vector<8x512xf32>
    %171 = arith.addf %168, %170 : vector<8x512xf32>
    %172 = vector.extract_strided_slice %171 {offsets = [0, 0], sizes = [8, 128], strides = [1, 1]} : vector<8x512xf32> to vector<8x128xf32>
    %173 = arith.negf %172 : vector<8x128xf32>
    %174 = math.exp %173 : vector<8x128xf32>
    %cst_56 = arith.constant 1.000000e+00 : f32
    %175 = vector.broadcast %cst_56 : f32 to vector<8x128xf32>
    %176 = arith.addf %175, %174 : vector<8x128xf32>
    %177 = arith.divf %175, %176 : vector<8x128xf32>
    %178 = vector.extract_strided_slice %171 {offsets = [0, 128], sizes = [8, 128], strides = [1, 1]} : vector<8x512xf32> to vector<8x128xf32>
    %179 = arith.negf %178 : vector<8x128xf32>
    %180 = math.exp %179 : vector<8x128xf32>
    %cst_57 = arith.constant 1.000000e+00 : f32
    %181 = vector.broadcast %cst_57 : f32 to vector<8x128xf32>
    %182 = arith.addf %181, %180 : vector<8x128xf32>
    %183 = arith.divf %181, %182 : vector<8x128xf32>
    %184 = vector.extract_strided_slice %171 {offsets = [0, 256], sizes = [8, 128], strides = [1, 1]} : vector<8x512xf32> to vector<8x128xf32>
    %185 = math.tanh %184 : vector<8x128xf32>
    %186 = vector.extract_strided_slice %171 {offsets = [0, 384], sizes = [8, 128], strides = [1, 1]} : vector<8x512xf32> to vector<8x128xf32>
    %187 = arith.negf %186 : vector<8x128xf32>
    %188 = math.exp %187 : vector<8x128xf32>
    %cst_58 = arith.constant 1.000000e+00 : f32
    %189 = vector.broadcast %cst_58 : f32 to vector<8x128xf32>
    %190 = arith.addf %189, %188 : vector<8x128xf32>
    %191 = arith.divf %189, %190 : vector<8x128xf32>
    %192 = arith.mulf %183, %163 : vector<8x128xf32>
    %193 = arith.mulf %177, %185 : vector<8x128xf32>
    %194 = arith.addf %192, %193 : vector<8x128xf32>
    %195 = math.tanh %194 : vector<8x128xf32>
    %196 = arith.mulf %191, %195 : vector<8x128xf32>
    %c6_i32 = arith.constant 6 : i32
    %197 = arith.index_cast %c6_i32 : i32 to index
    %c0_59 = arith.constant 0 : index
    %c0_60 = arith.constant 0 : index
    %198 = vector.load %arg6[%197, %c0_59, %c0_60] : memref<8x8x512xf32, #tpu.memory_space<vmem>>, vector<1x8x512xf32>
    %199 = vector.shape_cast %198 : vector<1x8x512xf32> to vector<8x512xf32>
    %c0_61 = arith.constant 0 : index
    %c0_62 = arith.constant 0 : index
    %200 = vector.load %arg3[%c0_61, %c0_62] : memref<128x512xf32, #tpu.memory_space<vmem>>, vector<128x512xf32>
    %cst_63 = arith.constant dense<0.000000e+00> : vector<8x512xf32>
    %201 = tpu.matmul %196, %200, %cst_63 {dimension_numbers = #tpu.dot_dimension_numbers<[1], [0], [0], [1], [0, 0, 1, 1], [], []>} : vector<8x128xf32>, vector<128x512xf32>, vector<8x512xf32> -> vector<8x512xf32>
    %202 = arith.addf %199, %201 : vector<8x512xf32>
    %203 = vector.extract_strided_slice %202 {offsets = [0, 0], sizes = [8, 128], strides = [1, 1]} : vector<8x512xf32> to vector<8x128xf32>
    %204 = arith.negf %203 : vector<8x128xf32>
    %205 = math.exp %204 : vector<8x128xf32>
    %cst_64 = arith.constant 1.000000e+00 : f32
    %206 = vector.broadcast %cst_64 : f32 to vector<8x128xf32>
    %207 = arith.addf %206, %205 : vector<8x128xf32>
    %208 = arith.divf %206, %207 : vector<8x128xf32>
    %209 = vector.extract_strided_slice %202 {offsets = [0, 128], sizes = [8, 128], strides = [1, 1]} : vector<8x512xf32> to vector<8x128xf32>
    %210 = arith.negf %209 : vector<8x128xf32>
    %211 = math.exp %210 : vector<8x128xf32>
    %cst_65 = arith.constant 1.000000e+00 : f32
    %212 = vector.broadcast %cst_65 : f32 to vector<8x128xf32>
    %213 = arith.addf %212, %211 : vector<8x128xf32>
    %214 = arith.divf %212, %213 : vector<8x128xf32>
    %215 = vector.extract_strided_slice %202 {offsets = [0, 256], sizes = [8, 128], strides = [1, 1]} : vector<8x512xf32> to vector<8x128xf32>
    %216 = math.tanh %215 : vector<8x128xf32>
    %217 = vector.extract_strided_slice %202 {offsets = [0, 384], sizes = [8, 128], strides = [1, 1]} : vector<8x512xf32> to vector<8x128xf32>
    %218 = arith.negf %217 : vector<8x128xf32>
    %219 = math.exp %218 : vector<8x128xf32>
    %cst_66 = arith.constant 1.000000e+00 : f32
    %220 = vector.broadcast %cst_66 : f32 to vector<8x128xf32>
    %221 = arith.addf %220, %219 : vector<8x128xf32>
    %222 = arith.divf %220, %221 : vector<8x128xf32>
    %223 = arith.mulf %214, %194 : vector<8x128xf32>
    %224 = arith.mulf %208, %216 : vector<8x128xf32>
    %225 = arith.addf %223, %224 : vector<8x128xf32>
    %226 = math.tanh %225 : vector<8x128xf32>
    %227 = arith.mulf %222, %226 : vector<8x128xf32>
    %c7_i32 = arith.constant 7 : i32
    %228 = arith.index_cast %c7_i32 : i32 to index
    %c0_67 = arith.constant 0 : index
    %c0_68 = arith.constant 0 : index
    %229 = vector.load %arg6[%228, %c0_67, %c0_68] : memref<8x8x512xf32, #tpu.memory_space<vmem>>, vector<1x8x512xf32>
    %230 = vector.shape_cast %229 : vector<1x8x512xf32> to vector<8x512xf32>
    %c0_69 = arith.constant 0 : index
    %c0_70 = arith.constant 0 : index
    %231 = vector.load %arg3[%c0_69, %c0_70] : memref<128x512xf32, #tpu.memory_space<vmem>>, vector<128x512xf32>
    %cst_71 = arith.constant dense<0.000000e+00> : vector<8x512xf32>
    %232 = tpu.matmul %227, %231, %cst_71 {dimension_numbers = #tpu.dot_dimension_numbers<[1], [0], [0], [1], [0, 0, 1, 1], [], []>} : vector<8x128xf32>, vector<128x512xf32>, vector<8x512xf32> -> vector<8x512xf32>
    %233 = arith.addf %230, %232 : vector<8x512xf32>
    %234 = vector.extract_strided_slice %233 {offsets = [0, 0], sizes = [8, 128], strides = [1, 1]} : vector<8x512xf32> to vector<8x128xf32>
    %235 = arith.negf %234 : vector<8x128xf32>
    %236 = math.exp %235 : vector<8x128xf32>
    %cst_72 = arith.constant 1.000000e+00 : f32
    %237 = vector.broadcast %cst_72 : f32 to vector<8x128xf32>
    %238 = arith.addf %237, %236 : vector<8x128xf32>
    %239 = arith.divf %237, %238 : vector<8x128xf32>
    %240 = vector.extract_strided_slice %233 {offsets = [0, 128], sizes = [8, 128], strides = [1, 1]} : vector<8x512xf32> to vector<8x128xf32>
    %241 = arith.negf %240 : vector<8x128xf32>
    %242 = math.exp %241 : vector<8x128xf32>
    %cst_73 = arith.constant 1.000000e+00 : f32
    %243 = vector.broadcast %cst_73 : f32 to vector<8x128xf32>
    %244 = arith.addf %243, %242 : vector<8x128xf32>
    %245 = arith.divf %243, %244 : vector<8x128xf32>
    %246 = vector.extract_strided_slice %233 {offsets = [0, 256], sizes = [8, 128], strides = [1, 1]} : vector<8x512xf32> to vector<8x128xf32>
    %247 = math.tanh %246 : vector<8x128xf32>
    %248 = vector.extract_strided_slice %233 {offsets = [0, 384], sizes = [8, 128], strides = [1, 1]} : vector<8x512xf32> to vector<8x128xf32>
    %249 = arith.negf %248 : vector<8x128xf32>
    %250 = math.exp %249 : vector<8x128xf32>
    %cst_74 = arith.constant 1.000000e+00 : f32
    %251 = vector.broadcast %cst_74 : f32 to vector<8x128xf32>
    %252 = arith.addf %251, %250 : vector<8x128xf32>
    %253 = arith.divf %251, %252 : vector<8x128xf32>
    %254 = arith.mulf %245, %225 : vector<8x128xf32>
    %255 = arith.mulf %239, %247 : vector<8x128xf32>
    %256 = arith.addf %254, %255 : vector<8x128xf32>
    %257 = math.tanh %256 : vector<8x128xf32>
    %258 = arith.mulf %253, %257 : vector<8x128xf32>
    %c8_i32 = arith.constant 8 : i32
    %c0_75 = arith.constant 0 : index
    %c0_76 = arith.constant 0 : index
    %259 = vector.load %arg5[%c0_75, %c0_76] : memref<8x128xf32, #tpu.memory_space<vmem>>, vector<8x128xf32>
    tpu.vector_store %arg5[%c0_75, %c0_76], %258 {strides = array<i32>} : memref<8x128xf32, #tpu.memory_space<vmem>>, vector<8x128xf32>,
    return
  }
  func.func @transform_0(%arg0: i32) -> (i32, i32, i32) {
    %c0_i32 = arith.constant 0 : i32
    %c0_i32_0 = arith.constant 0 : i32
    %c0_i32_1 = arith.constant 0 : i32
    return %c0_i32, %arg0, %c0_i32_0 : i32, i32, i32
  }
  func.func @transform_1(%arg0: i32) -> (i32, i32) {
    %c0_i32 = arith.constant 0 : i32
    %c0_i32_0 = arith.constant 0 : i32
    %c0_i32_1 = arith.constant 0 : i32
    return %c0_i32, %c0_i32_0 : i32, i32
  }
  func.func @transform_2(%arg0: i32) -> (i32, i32) {
    %c0_i32 = arith.constant 0 : i32
    %c0_i32_0 = arith.constant 0 : i32
    %c0_i32_1 = arith.constant 0 : i32
    return %c0_i32, %c0_i32_0 : i32, i32
  }
  func.func @transform_3(%arg0: i32) -> (i32, i32) {
    %c0_i32 = arith.constant 0 : i32
    %c0_i32_0 = arith.constant 0 : i32
    %c0_i32_1 = arith.constant 0 : i32
    return %c0_i32, %c0_i32_0 : i32, i32
  }
  func.func @transform_4(%arg0: i32) -> (i32, i32) {
    %c0_i32 = arith.constant 0 : i32
    %c0_i32_0 = arith.constant 0 : i32
    return %arg0, %c0_i32 : i32, i32
  }
}

</mosaic_0001>

<llo_original>
// kernel: tpu_custom_call.1
$region0: #{tpu_custom_call.1}
  #allocation0 [shape = 'u32[]', space=smem, size = 0x4, offset = 0x4, fixed_abs, tag = 'smem constant byte address 0x4 - core index']
  #allocation1 [shape = 'u32[144,128]{1,0:T(1,128)}', space=vmem, size = 0x12000, scoped, tag = 'internal scratch']
  #allocation2 [shape = 'f32[8,8,512]{2,1,0:T(8,128)}', space=vmem, size = 0x20000, scoped, tag = 'scratch operand']
  %s0 = inlined_call_operand.hbm [shape: f32[8,8,128], index: 0, kind: input, shape index: {}]
  %s1 = inlined_call_operand.hbm [shape: f32[128,512], index: 1, kind: input, shape index: {}]
  %s2 = inlined_call_operand.hbm [shape: f32[128,512], index: 2, kind: input, shape index: {}]
  %s3 = inlined_call_operand.vmem [shape: f32[1,512], index: 3, kind: input, shape index: {}]
  %s4 = inlined_call_operand.hbm [shape: f32[8,128], index: 4, kind: output, shape index: {}]
  %s5 = sld [smem:[#allocation0]]
  $region38: #{tpu_custom_call.1} parent=0
    _
  %s7 = ssub.s32 1, %s5
  %s8 = scalar_select 0, %s7, %s5
  $region1: #{tpu_custom_call.1} parent=0
    #allocation3 [shape = 'u8[32768]{0}', space=vmem, size = 0x8000, scoped, tag = 'input window, operand 0, single buffered']
    #allocation4 [shape = 's32[1]{0}', space=sflag, size = 0x4, scoped, tag = 'scoped memory for tpu_custom_call.1']
    #allocation5 [shape = 's32[1]{0}', space=sflag, size = 0x4, scoped, tag = 'scoped memory for tpu_custom_call.1']
    #allocation6 [shape = 'u8[262144]{0}', space=vmem, size = 0x40000, scoped, tag = 'input window, operand 1, single buffered']
    #allocation7 [shape = 's32[1]{0}', space=sflag, size = 0x4, scoped, tag = 'scoped memory for tpu_custom_call.1']
    #allocation8 [shape = 'u8[262144]{0}', space=vmem, size = 0x40000, scoped, tag = 'input window, operand 2, single buffered']
    #allocation9 [shape = 'u8[4096]{0}', space=vmem, size = 0x1000, scoped, tag = 'output window, operand 0, single buffered']
    %9 = vsyncpa [#allocation4], 0
    %10 = vsyncpa [#allocation7], 0
    %11 = vsyncpa [#allocation5], 0
    // Predicated region
    $region2: #{tpu_custom_call.1} parent=1 // pred_check
      _
    $region3: #{tpu_custom_call.1} parent=1 // pred_check_branch
      %13 = sbr.rel (0) target = $region5
    $region4: #{tpu_custom_call.1} parent=1 // pred_region
      %s15 = ssub.s32 1024, 1024
      %16 = vsyncadd [#allocation4], %s15
      %s17 = sshll.u32 [#allocation3], 4
      %s18 = int_to_ptr.vmem [resolvable:$true] %s17
      %23 = dma.hbm_to_vmem [thread:$0]  %s0, 1024, %s18, [#allocation4], 128, 128, 8
    $region5: #{tpu_custom_call.1} parent=1 // pred_fallthru
      _
    // Predicated region
    $region6: #{tpu_custom_call.1} parent=1 // pred_check
      _
    $region7: #{tpu_custom_call.1} parent=1 // pred_check_branch
      %25 = sbr.rel (0) target = $region9
    $region8: #{tpu_custom_call.1} parent=1 // pred_region
      %s27 = ssub.s32 8192, 8192
      %28 = vsyncadd [#allocation7], %s27
      %s29 = sshll.u32 [#allocation6], 4
      %s30 = int_to_ptr.vmem [resolvable:$true] %s29
      %35 = dma.hbm_to_vmem [thread:$0]  %s1, 8192, %s30, [#allocation7], 512, 512, 32
    $region9: #{tpu_custom_call.1} parent=1 // pred_fallthru
      _
    // Predicated region
    $region10: #{tpu_custom_call.1} parent=1 // pred_check
      _
    $region11: #{tpu_custom_call.1} parent=1 // pred_check_branch
      %37 = sbr.rel (0) target = $region13
    $region12: #{tpu_custom_call.1} parent=1 // pred_region
      %s39 = ssub.s32 8192, 8192
      %40 = vsyncadd [#allocation7], %s39
      %s41 = sshll.u32 [#allocation8], 4
      %s42 = int_to_ptr.vmem [resolvable:$true] %s41
      %47 = dma.hbm_to_vmem [thread:$0]  %s2, 8192, %s42, [#allocation7], 512, 512, 32
    $region13: #{tpu_custom_call.1} parent=1 // pred_fallthru
      _
    // Predicated region
    $region14: #{tpu_custom_call.1} parent=1 // pred_check
      _
    $region15: #{tpu_custom_call.1} parent=1 // pred_check_branch
      %49 = sbr.rel (0) target = $region17
    $region16: #{tpu_custom_call.1} parent=1 // pred_region
      _
    $region17: #{tpu_custom_call.1} parent=1 // pred_fallthru
      _
    // Predicated region
    $region18: #{tpu_custom_call.1} parent=1 // pred_check
      _
    $region19: #{tpu_custom_call.1} parent=1 // pred_check_branch
      %51 = sbr.rel (0) target = $region21
    $region20: #{tpu_custom_call.1} parent=1 // pred_region
      %52 = dma.done [#allocation4], 1024
    $region21: #{tpu_custom_call.1} parent=1 // pred_fallthru
      _
    // Predicated region
    $region22: #{tpu_custom_call.1} parent=1 // pred_check
      _
    $region23: #{tpu_custom_call.1} parent=1 // pred_check_branch
      %54 = sbr.rel (0) target = $region25
    $region24: #{tpu_custom_call.1} parent=1 // pred_region
      %55 = dma.done [#allocation7], 8192
    $region25: #{tpu_custom_call.1} parent=1 // pred_fallthru
      _
    // Predicated region
    $region26: #{tpu_custom_call.1} parent=1 // pred_check
      _
    $region27: #{tpu_custom_call.1} parent=1 // pred_check_branch
      %57 = sbr.rel (0) target = $region29
    $region28: #{tpu_custom_call.1} parent=1 // pred_region
      %58 = dma.done [#allocation7], 8192
    $region29: #{tpu_custom_call.1} parent=1 // pred_fallthru
      _
    %v59 = vld [vmem:[#allocation3] sm:$0xff]
    %v60 = vld [vmem:[#allocation3 + $0x8] sm:$0xff]
    %v61 = vld [vmem:[#allocation3 + $0x10] sm:$0xff]
    %v62 = vld [vmem:[#allocation3 + $0x18] sm:$0xff]
    %v63 = vld [vmem:[#allocation3 + $0x20] sm:$0xff]
    %v64 = vld [vmem:[#allocation3 + $0x28] sm:$0xff]
    %v65 = vld [vmem:[#allocation3 + $0x30] sm:$0xff]
    %v66 = vld [vmem:[#allocation3 + $0x38] sm:$0xff]
    %v67 = vld [vmem:[#allocation6] sm:$0xff]
    %v68 = vld [vmem:[#allocation6 + $0x8] sm:$0xff]
    %v69 = vld [vmem:[#allocation6 + $0x10] sm:$0xff]
    %v70 = vld [vmem:[#allocation6 + $0x18] sm:$0xff]
    %v71 = vld [vmem:[#allocation6 + $0x20] sm:$0xff]
    %v72 = vld [vmem:[#allocation6 + $0x28] sm:$0xff]
    %v73 = vld [vmem:[#allocation6 + $0x30] sm:$0xff]
    %v74 = vld [vmem:[#allocation6 + $0x38] sm:$0xff]
    %v75 = vld [vmem:[#allocation6 + $0x40] sm:$0xff]
    %v76 = vld [vmem:[#allocation6 + $0x48] sm:$0xff]
    %v77 = vld [vmem:[#allocation6 + $0x50] sm:$0xff]
    %v78 = vld [vmem:[#allocation6 + $0x58] sm:$0xff]
    %v79 = vld [vmem:[#allocation6 + $0x60] sm:$0xff]
    %v80 = vld [vmem:[#allocation6 + $0x68] sm:$0xff]
    %v81 = vld [vmem:[#allocation6 + $0x70] sm:$0xff]
    %v82 = vld [vmem:[#allocation6 + $0x78] sm:$0xff]
    %v83 = vld [vmem:[#allocation6 + $0x80] sm:$0xff]
    %v84 = vld [vmem:[#allocation6 + $0x88] sm:$0xff]
    %v85 = vld [vmem:[#allocation6 + $0x90] sm:$0xff]
    %v86 = vld [vmem:[#allocation6 + $0x98] sm:$0xff]
    %v87 = vld [vmem:[#allocation6 + $0xa0] sm:$0xff]
    %v88 = vld [vmem:[#allocation6 + $0xa8] sm:$0xff]
    %v89 = vld [vmem:[#allocation6 + $0xb0] sm:$0xff]
    %v90 = vld [vmem:[#allocation6 + $0xb8] sm:$0xff]
    %v91 = vld [vmem:[#allocation6 + $0xc0] sm:$0xff]
    %v92 = vld [vmem:[#allocation6 + $0xc8] sm:$0xff]
    %v93 = vld [vmem:[#allocation6 + $0xd0] sm:$0xff]
    %v94 = vld [vmem:[#allocation6 + $0xd8] sm:$0xff]
    %v95 = vld [vmem:[#allocation6 + $0xe0] sm:$0xff]
    %v96 = vld [vmem:[#allocation6 + $0xe8] sm:$0xff]
    %v97 = vld [vmem:[#allocation6 + $0xf0] sm:$0xff]
    %v98 = vld [vmem:[#allocation6 + $0xf8] sm:$0xff]
    %v99 = vld [vmem:[#allocation6 + $0x100] sm:$0xff]
    %v100 = vld [vmem:[#allocation6 + $0x108] sm:$0xff]
    %v101 = vld [vmem:[#allocation6 + $0x110] sm:$0xff]
    %v102 = vld [vmem:[#allocation6 + $0x118] sm:$0xff]
    %v103 = vld [vmem:[#allocation6 + $0x120] sm:$0xff]
    %v104 = vld [vmem:[#allocation6 + $0x128] sm:$0xff]
    %v105 = vld [vmem:[#allocation6 + $0x130] sm:$0xff]
    %v106 = vld [vmem:[#allocation6 + $0x138] sm:$0xff]
    %v107 = vld [vmem:[#allocation6 + $0x140] sm:$0xff]
    %v108 = vld [vmem:[#allocation6 + $0x148] sm:$0xff]
    %v109 = vld [vmem:[#allocation6 + $0x150] sm:$0xff]
    %v110 = vld [vmem:[#allocation6 + $0x158] sm:$0xff]
    %v111 = vld [vmem:[#allocation6 + $0x160] sm:$0xff]
    %v112 = vld [vmem:[#allocation6 + $0x168] sm:$0xff]
    %v113 = vld [vmem:[#allocation6 + $0x170] sm:$0xff]
    %v114 = vld [vmem:[#allocation6 + $0x178] sm:$0xff]
    %v115 = vld [vmem:[#allocation6 + $0x180] sm:$0xff]
    %v116 = vld [vmem:[#allocation6 + $0x188] sm:$0xff]
    %v117 = vld [vmem:[#allocation6 + $0x190] sm:$0xff]
    %v118 = vld [vmem:[#allocation6 + $0x198] sm:$0xff]
    %v119 = vld [vmem:[#allocation6 + $0x1a0] sm:$0xff]
    %v120 = vld [vmem:[#allocation6 + $0x1a8] sm:$0xff]
    %v121 = vld [vmem:[#allocation6 + $0x1b0] sm:$0xff]
    %v122 = vld [vmem:[#allocation6 + $0x1b8] sm:$0xff]
    %v123 = vld [vmem:[#allocation6 + $0x1c0] sm:$0xff]
    %v124 = vld [vmem:[#allocation6 + $0x1c8] sm:$0xff]
    %v125 = vld [vmem:[#allocation6 + $0x1d0] sm:$0xff]
    %v126 = vld [vmem:[#allocation6 + $0x1d8] sm:$0xff]
    %v127 = vld [vmem:[#allocation6 + $0x1e0] sm:$0xff]
    %v128 = vld [vmem:[#allocation6 + $0x1e8] sm:$0xff]
    %v129 = vld [vmem:[#allocation6 + $0x1f0] sm:$0xff]
    %v130 = vld [vmem:[#allocation6 + $0x1f8] sm:$0xff]
    %v131 = vld [vmem:[%s3] sm:$0xf]
    %v133 = vlaneseq
    %v134 = vshrl.u32 %v133, 7
    %v135 = vsub.s32 0, %v134
    %v136 = vrot.slane %v131, %v135
    %v137 = vlaneseq
    %v138 = vshrl.u32 %v137, 7
    %v139 = vsub.s32 1, %v138
    %v140 = vrot.slane %v131, %v139
    %v141 = vlaneseq
    %v142 = vshrl.u32 %v141, 7
    %v143 = vsub.s32 2, %v142
    %v144 = vrot.slane %v131, %v143
    %v145 = vlaneseq
    %v146 = vshrl.u32 %v145, 7
    %v147 = vsub.s32 3, %v146
    %v148 = vrot.slane %v131, %v147
    %153 = vmatprep.subr.mxu0 %v68
    %154 = vmatpush1.msra.mxu0 %v67
    %155 = vmatprep.subr.mxu0 %v72
    %156 = vmatpush1.msra.mxu0 %v71
    %157 = vmatprep.subr.mxu0 %v76
    %158 = vmatpush1.msra.mxu0 %v75
    %159 = vmatprep.subr.mxu0 %v80
    %160 = vmatpush1.msra.mxu0 %v79
    %161 = vmatprep.subr.mxu0 %v84
    %162 = vmatpush1.msra.mxu0 %v83
    %163 = vmatprep.subr.mxu0 %v88
    %164 = vmatpush1.msra.mxu0 %v87
    %165 = vmatprep.subr.mxu0 %v92
    %166 = vmatpush1.msra.mxu0 %v91
    %167 = vmatprep.subr.mxu0 %v96
    %168 = vmatpush1.msra.mxu0 %v95
    %169 = vmatprep.subr.mxu0 %v100
    %170 = vmatpush1.msra.mxu0 %v99
    %171 = vmatprep.subr.mxu0 %v104
    %172 = vmatpush1.msra.mxu0 %v103
    %173 = vmatprep.subr.mxu0 %v108
    %174 = vmatpush1.msra.mxu0 %v107
    %175 = vmatprep.subr.mxu0 %v112
    %176 = vmatpush1.msra.mxu0 %v111
    %177 = vmatprep.subr.mxu0 %v116
    %178 = vmatpush1.msra.mxu0 %v115
    %179 = vmatprep.subr.mxu0 %v120
    %180 = vmatpush1.msra.mxu0 %v119
    %181 = vmatprep.subr.mxu0 %v124
    %182 = vmatpush1.msra.mxu0 %v123
    %183 = vmatprep.subr.mxu0 %v128
    %184 = vmatpush1.msra.mxu0 %v127
    %185 = vmatprep.subr.mxu0 0.0
    %186 = vmatpush1.msra.mxu0 0.0
    %187 = vmatprep.subr.mxu0 0.0
    %188 = vmatpush1.msra.mxu0 0.0
    %189 = vmatprep.subr.mxu0 0.0
    %190 = vmatpush1.msra.mxu0 0.0
    %191 = vmatprep.subr.mxu0 0.0
    %192 = vmatpush1.msra.mxu0 0.0
    %193 = vmatprep.subr.mxu0 0.0
    %194 = vmatpush1.msra.mxu0 0.0
    %195 = vmatprep.subr.mxu0 0.0
    %196 = vmatpush1.msra.mxu0 0.0
    %197 = vmatprep.subr.mxu0 0.0
    %198 = vmatpush1.msra.mxu0 0.0
    %199 = vmatprep.subr.mxu0 0.0
    %200 = vmatpush1.msra.mxu0 0.0
    %201 = vmatprep.subr.mxu0 0.0
    %202 = vmatpush1.msra.mxu0 0.0
    %203 = vmatprep.subr.mxu0 0.0
    %204 = vmatpush1.msra.mxu0 0.0
    %205 = vmatprep.subr.mxu0 0.0
    %206 = vmatpush1.msra.mxu0 0.0
    %207 = vmatprep.subr.mxu0 0.0
    %208 = vmatpush1.msra.mxu0 0.0
    %209 = vmatprep.subr.mxu0 0.0
    %210 = vmatpush1.msra.mxu0 0.0
    %211 = vmatprep.subr.mxu0 0.0
    %212 = vmatpush1.msra.mxu0 0.0
    %213 = vmatprep.subr.mxu0 0.0
    %214 = vmatpush1.msra.mxu0 0.0
    %215 = vmatprep.subr.mxu0 0.0
    %216 = vmatpush1.msra.mxu0 0.0
    %217 = vmatprep.mubr.f32.mxu0 0.0
    %218 = vmatmul.mubr.f32.gmra.mrb[0].mxu0 %v59
    %v219 = vpop.f32.mrb[0].mxu0
    %v220 = vadd.f32 %v136, %v219
    %v221 = vpop.f32.mrb[0].mxu0
    %v222 = vadd.f32 %v140, %v221
    %223 = vmatprep.mubr.f32.mxu0 0.0
    %224 = vmatmul.mubr.f32.gmra.mrb[0].mxu0 %v60
    %v225 = vpop.f32.mrb[0].mxu0
    %v226 = vadd.f32 %v136, %v225
    %v227 = vpop.f32.mrb[0].mxu0
    %v228 = vadd.f32 %v140, %v227
    %229 = vmatprep.mubr.f32.mxu0 0.0
    %230 = vmatmul.mubr.f32.gmra.mrb[0].mxu0 %v61
    %v231 = vpop.f32.mrb[0].mxu0
    %v232 = vadd.f32 %v136, %v231
    %v233 = vpop.f32.mrb[0].mxu0
    %v234 = vadd.f32 %v140, %v233
    %235 = vmatprep.mubr.f32.mxu0 0.0
    %236 = vmatmul.mubr.f32.gmra.mrb[0].mxu0 %v62
    %v237 = vpop.f32.mrb[0].mxu0
    %v238 = vadd.f32 %v136, %v237
    %v239 = vpop.f32.mrb[0].mxu0
    %v240 = vadd.f32 %v140, %v239
    %241 = vmatprep.mubr.f32.mxu0 0.0
    %242 = vmatmul.mubr.f32.gmra.mrb[0].mxu0 %v63
    %v243 = vpop.f32.mrb[0].mxu0
    %v244 = vadd.f32 %v136, %v243
    %v245 = vpop.f32.mrb[0].mxu0
    %v246 = vadd.f32 %v140, %v245
    %247 = vmatprep.mubr.f32.mxu0 0.0
    %248 = vmatmul.mubr.f32.gmra.mrb[0].mxu0 %v64
    %v249 = vpop.f32.mrb[0].mxu0
    %v250 = vadd.f32 %v136, %v249
    %v251 = vpop.f32.mrb[0].mxu0
    %v252 = vadd.f32 %v140, %v251
    %253 = vmatprep.mubr.f32.mxu0 0.0
    %254 = vmatmul.mubr.f32.gmra.mrb[0].mxu0 %v65
    %v255 = vpop.f32.mrb[0].mxu0
    %v256 = vadd.f32 %v136, %v255
    %v257 = vpop.f32.mrb[0].mxu0
    %v258 = vadd.f32 %v140, %v257
    %259 = vmatprep.mubr.f32.mxu0 0.0
    %260 = vmatmul.mubr.f32.gmra.mrb[0].mxu0 %v66
    %v261 = vpop.f32.mrb[0].mxu0
    %v262 = vadd.f32 %v136, %v261
    %v263 = vpop.f32.mrb[0].mxu0
    %v264 = vadd.f32 %v140, %v263
    %265 = vdwg.mxu0
    %266 = vmatprep.subr.mxu0 %v70
    %267 = vmatpush1.msra.mxu0 %v69
    %268 = vmatprep.subr.mxu0 %v74
    %269 = vmatpush1.msra.mxu0 %v73
    %270 = vmatprep.subr.mxu0 %v78
    %271 = vmatpush1.msra.mxu0 %v77
    %272 = vmatprep.subr.mxu0 %v82
    %273 = vmatpush1.msra.mxu0 %v81
    %274 = vmatprep.subr.mxu0 %v86
    %275 = vmatpush1.msra.mxu0 %v85
    %276 = vmatprep.subr.mxu0 %v90
    %277 = vmatpush1.msra.mxu0 %v89
    %278 = vmatprep.subr.mxu0 %v94
    %279 = vmatpush1.msra.mxu0 %v93
    %280 = vmatprep.subr.mxu0 %v98
    %281 = vmatpush1.msra.mxu0 %v97
    %282 = vmatprep.subr.mxu0 %v102
    %283 = vmatpush1.msra.mxu0 %v101
    %284 = vmatprep.subr.mxu0 %v106
    %285 = vmatpush1.msra.mxu0 %v105
    %286 = vmatprep.subr.mxu0 %v110
    %287 = vmatpush1.msra.mxu0 %v109
    %288 = vmatprep.subr.mxu0 %v114
    %289 = vmatpush1.msra.mxu0 %v113
    %290 = vmatprep.subr.mxu0 %v118
    %291 = vmatpush1.msra.mxu0 %v117
    %292 = vmatprep.subr.mxu0 %v122
    %293 = vmatpush1.msra.mxu0 %v121
    %294 = vmatprep.subr.mxu0 %v126
    %295 = vmatpush1.msra.mxu0 %v125
    %296 = vmatprep.subr.mxu0 %v130
    %297 = vmatpush1.msra.mxu0 %v129
    %298 = vmatprep.subr.mxu0 0.0
    %299 = vmatpush1.msra.mxu0 0.0
    %300 = vmatprep.subr.mxu0 0.0
    %301 = vmatpush1.msra.mxu0 0.0
    %302 = vmatprep.subr.mxu0 0.0
    %303 = vmatpush1.msra.mxu0 0.0
    %304 = vmatprep.subr.mxu0 0.0
    %305 = vmatpush1.msra.mxu0 0.0
    %306 = vmatprep.subr.mxu0 0.0
    %307 = vmatpush1.msra.mxu0 0.0
    %308 = vmatprep.subr.mxu0 0.0
    %309 = vmatpush1.msra.mxu0 0.0
    %310 = vmatprep.subr.mxu0 0.0
    %311 = vmatpush1.msra.mxu0 0.0
    %312 = vmatprep.subr.mxu0 0.0
    %313 = vmatpush1.msra.mxu0 0.0
    %314 = vmatprep.subr.mxu0 0.0
    %315 = vmatpush1.msra.mxu0 0.0
    %316 = vmatprep.subr.mxu0 0.0
    %317 = vmatpush1.msra.mxu0 0.0
    %318 = vmatprep.subr.mxu0 0.0
    %319 = vmatpush1.msra.mxu0 0.0
    %320 = vmatprep.subr.mxu0 0.0
    %321 = vmatpush1.msra.mxu0 0.0
    %322 = vmatprep.subr.mxu0 0.0
    %323 = vmatpush1.msra.mxu0 0.0
    %324 = vmatprep.subr.mxu0 0.0
    %325 = vmatpush1.msra.mxu0 0.0
    %326 = vmatprep.subr.mxu0 0.0
    %327 = vmatpush1.msra.mxu0 0.0
    %328 = vmatprep.subr.mxu0 0.0
    %329 = vmatpush1.msra.mxu0 0.0
    %330 = vmatprep.mubr.f32.mxu0 0.0
    %331 = vmatmul.mubr.f32.gmra.mrb[0].mxu0 %v59
    %v332 = vpop.f32.mrb[0].mxu0
    %v333 = vadd.f32 %v144, %v332
    %v334 = vpop.f32.mrb[0].mxu0
    %v335 = vadd.f32 %v148, %v334
    %336 = vmatprep.mubr.f32.mxu0 0.0
    %337 = vmatmul.mubr.f32.gmra.mrb[0].mxu0 %v60
    %v338 = vpop.f32.mrb[0].mxu0
    %v339 = vadd.f32 %v144, %v338
    %v340 = vpop.f32.mrb[0].mxu0
    %v341 = vadd.f32 %v148, %v340
    %342 = vmatprep.mubr.f32.mxu0 0.0
    %343 = vmatmul.mubr.f32.gmra.mrb[0].mxu0 %v61
    %v344 = vpop.f32.mrb[0].mxu0
    %v345 = vadd.f32 %v144, %v344
    %v346 = vpop.f32.mrb[0].mxu0
    %v347 = vadd.f32 %v148, %v346
    %348 = vmatprep.mubr.f32.mxu0 0.0
    %349 = vmatmul.mubr.f32.gmra.mrb[0].mxu0 %v62
    %v350 = vpop.f32.mrb[0].mxu0
    %v351 = vadd.f32 %v144, %v350
    %v352 = vpop.f32.mrb[0].mxu0
    %v353 = vadd.f32 %v148, %v352
    %354 = vmatprep.mubr.f32.mxu0 0.0
    %355 = vmatmul.mubr.f32.gmra.mrb[0].mxu0 %v63
    %v356 = vpop.f32.mrb[0].mxu0
    %v357 = vadd.f32 %v144, %v356
    %v358 = vpop.f32.mrb[0].mxu0
    %v359 = vadd.f32 %v148, %v358
    %360 = vmatprep.mubr.f32.mxu0 0.0
    %361 = vmatmul.mubr.f32.gmra.mrb[0].mxu0 %v64
    %v362 = vpop.f32.mrb[0].mxu0
    %v363 = vadd.f32 %v144, %v362
    %v364 = vpop.f32.mrb[0].mxu0
    %v365 = vadd.f32 %v148, %v364
    %366 = vmatprep.mubr.f32.mxu0 0.0
    %367 = vmatmul.mubr.f32.gmra.mrb[0].mxu0 %v65
    %v368 = vpop.f32.mrb[0].mxu0
    %v369 = vadd.f32 %v144, %v368
    %v370 = vpop.f32.mrb[0].mxu0
    %v371 = vadd.f32 %v148, %v370
    %372 = vmatprep.mubr.f32.mxu0 0.0
    %373 = vmatmul.mubr.f32.gmra.mrb[0].mxu0 %v66
    %v374 = vpop.f32.mrb[0].mxu0
    %v375 = vadd.f32 %v144, %v374
    %v376 = vpop.f32.mrb[0].mxu0
    %v377 = vadd.f32 %v148, %v376
    %378 = vdwg.mxu0
    %379 = vst [vmem:[#allocation2] sm:$0xff] %v220
    %380 = vst [vmem:[#allocation2 + $0x8] sm:$0xff] %v222
    %381 = vst [vmem:[#allocation2 + $0x10] sm:$0xff] %v333
    %382 = vst [vmem:[#allocation2 + $0x18] sm:$0xff] %v335
    %383 = vst [vmem:[#allocation2 + $0x20] sm:$0xff] %v226
    %384 = vst [vmem:[#allocation2 + $0x28] sm:$0xff] %v228
    %385 = vst [vmem:[#allocation2 + $0x30] sm:$0xff] %v339
    %386 = vst [vmem:[#allocation2 + $0x38] sm:$0xff] %v341
    %387 = vst [vmem:[#allocation2 + $0x40] sm:$0xff] %v232
    %388 = vst [vmem:[#allocation2 + $0x48] sm:$0xff] %v234
    %389 = vst [vmem:[#allocation2 + $0x50] sm:$0xff] %v345
    %390 = vst [vmem:[#allocation2 + $0x58] sm:$0xff] %v347
    %391 = vst [vmem:[#allocation2 + $0x60] sm:$0xff] %v238
    %392 = vst [vmem:[#allocation2 + $0x68] sm:$0xff] %v240
    %393 = vst [vmem:[#allocation2 + $0x70] sm:$0xff] %v351
    %394 = vst [vmem:[#allocation2 + $0x78] sm:$0xff] %v353
    %395 = vst [vmem:[#allocation2 + $0x80] sm:$0xff] %v244
    %396 = vst [vmem:[#allocation2 + $0x88] sm:$0xff] %v246
    %397 = vst [vmem:[#allocation2 + $0x90] sm:$0xff] %v357
    %398 = vst [vmem:[#allocation2 + $0x98] sm:$0xff] %v359
    %399 = vst [vmem:[#allocation2 + $0xa0] sm:$0xff] %v250
    %400 = vst [vmem:[#allocation2 + $0xa8] sm:$0xff] %v252
    %401 = vst [vmem:[#allocation2 + $0xb0] sm:$0xff] %v363
    %402 = vst [vmem:[#allocation2 + $0xb8] sm:$0xff] %v365
    %403 = vst [vmem:[#allocation2 + $0xc0] sm:$0xff] %v256
    %404 = vst [vmem:[#allocation2 + $0xc8] sm:$0xff] %v258
    %405 = vst [vmem:[#allocation2 + $0xd0] sm:$0xff] %v369
    %406 = vst [vmem:[#allocation2 + $0xd8] sm:$0xff] %v371
    %407 = vst [vmem:[#allocation2 + $0xe0] sm:$0xff] %v262
    %408 = vst [vmem:[#allocation2 + $0xe8] sm:$0xff] %v264
    %409 = vst [vmem:[#allocation2 + $0xf0] sm:$0xff] %v375
    %410 = vst [vmem:[#allocation2 + $0xf8] sm:$0xff] %v377
    %v411 = vld [vmem:[#allocation2] sm:$0xff]
    %v412 = vld [vmem:[#allocation2 + $0x8] sm:$0xff]
    %v413 = vld [vmem:[#allocation2 + $0x10] sm:$0xff]
    %v414 = vld [vmem:[#allocation2 + $0x18] sm:$0xff]
    %v415 = vld [vmem:[#allocation8] sm:$0xff]
    %v416 = vld [vmem:[#allocation8 + $0x8] sm:$0xff]
    %v417 = vld [vmem:[#allocation8 + $0x10] sm:$0xff]
    %v418 = vld [vmem:[#allocation8 + $0x18] sm:$0xff]
    %v419 = vld [vmem:[#allocation8 + $0x20] sm:$0xff]
    %v420 = vld [vmem:[#allocation8 + $0x28] sm:$0xff]
    %v421 = vld [vmem:[#allocation8 + $0x30] sm:$0xff]
    %v422 = vld [vmem:[#allocation8 + $0x38] sm:$0xff]
    %v423 = vld [vmem:[#allocation8 + $0x40] sm:$0xff]
    %v424 = vld [vmem:[#allocation8 + $0x48] sm:$0xff]
    %v425 = vld [vmem:[#allocation8 + $0x50] sm:$0xff]
    %v426 = vld [vmem:[#allocation8 + $0x58] sm:$0xff]
    %v427 = vld [vmem:[#allocation8 + $0x60] sm:$0xff]
    %v428 = vld [vmem:[#allocation8 + $0x68] sm:$0xff]
    %v429 = vld [vmem:[#allocation8 + $0x70] sm:$0xff]
    %v430 = vld [vmem:[#allocation8 + $0x78] sm:$0xff]
    %v431 = vld [vmem:[#allocation8 + $0x80] sm:$0xff]
    %v432 = vld [vmem:[#allocation8 + $0x88] sm:$0xff]
    %v433 = vld [vmem:[#allocation8 + $0x90] sm:$0xff]
    %v434 = vld [vmem:[#allocation8 + $0x98] sm:$0xff]
    %v435 = vld [vmem:[#allocation8 + $0xa0] sm:$0xff]
    %v436 = vld [vmem:[#allocation8 + $0xa8] sm:$0xff]
    %v437 = vld [vmem:[#allocation8 + $0xb0] sm:$0xff]
    %v438 = vld [vmem:[#allocation8 + $0xb8] sm:$0xff]
    %v439 = vld [vmem:[#allocation8 + $0xc0] sm:$0xff]
    %v440 = vld [vmem:[#allocation8 + $0xc8] sm:$0xff]
    %v441 = vld [vmem:[#allocation8 + $0xd0] sm:$0xff]
    %v442 = vld [vmem:[#allocation8 + $0xd8] sm:$0xff]
    %v443 = vld [vmem:[#allocation8 + $0xe0] sm:$0xff]
    %v444 = vld [vmem:[#allocation8 + $0xe8] sm:$0xff]
    %v445 = vld [vmem:[#allocation8 + $0xf0] sm:$0xff]
    %v446 = vld [vmem:[#allocation8 + $0xf8] sm:$0xff]
    %v447 = vld [vmem:[#allocation8 + $0x100] sm:$0xff]
    %v448 = vld [vmem:[#allocation8 + $0x108] sm:$0xff]
    %v449 = vld [vmem:[#allocation8 + $0x110] sm:$0xff]
    %v450 = vld [vmem:[#allocation8 + $0x118] sm:$0xff]
    %v451 = vld [vmem:[#allocation8 + $0x120] sm:$0xff]
    %v452 = vld [vmem:[#allocation8 + $0x128] sm:$0xff]
    %v453 = vld [vmem:[#allocation8 + $0x130] sm:$0xff]
    %v454 = vld [vmem:[#allocation8 + $0x138] sm:$0xff]
    %v455 = vld [vmem:[#allocation8 + $0x140] sm:$0xff]
    %v456 = vld [vmem:[#allocation8 + $0x148] sm:$0xff]
    %v457 = vld [vmem:[#allocation8 + $0x150] sm:$0xff]
    %v458 = vld [vmem:[#allocation8 + $0x158] sm:$0xff]
    %v459 = vld [vmem:[#allocation8 + $0x160] sm:$0xff]
    %v460 = vld [vmem:[#allocation8 + $0x168] sm:$0xff]
    %v461 = vld [vmem:[#allocation8 + $0x170] sm:$0xff]
    %v462 = vld [vmem:[#allocation8 + $0x178] sm:$0xff]
    %v463 = vld [vmem:[#allocation8 + $0x180] sm:$0xff]
    %v464 = vld [vmem:[#allocation8 + $0x188] sm:$0xff]
    %v465 = vld [vmem:[#allocation8 + $0x190] sm:$0xff]
    %v466 = vld [vmem:[#allocation8 + $0x198] sm:$0xff]
    %v467 = vld [vmem:[#allocation8 + $0x1a0] sm:$0xff]
    %v468 = vld [vmem:[#allocation8 + $0x1a8] sm:$0xff]
    %v469 = vld [vmem:[#allocation8 + $0x1b0] sm:$0xff]
    %v470 = vld [vmem:[#allocation8 + $0x1b8] sm:$0xff]
    %v471 = vld [vmem:[#allocation8 + $0x1c0] sm:$0xff]
    %v472 = vld [vmem:[#allocation8 + $0x1c8] sm:$0xff]
    %v473 = vld [vmem:[#allocation8 + $0x1d0] sm:$0xff]
    %v474 = vld [vmem:[#allocation8 + $0x1d8] sm:$0xff]
    %v475 = vld [vmem:[#allocation8 + $0x1e0] sm:$0xff]
    %v476 = vld [vmem:[#allocation8 + $0x1e8] sm:$0xff]
    %v477 = vld [vmem:[#allocation8 + $0x1f0] sm:$0xff]
    %v478 = vld [vmem:[#allocation8 + $0x1f8] sm:$0xff]
    %479 = vmatprep.subr.mxu0 %v416
    %480 = vmatpush1.msra.mxu0 %v415
    %481 = vmatprep.subr.mxu0 %v420
    %482 = vmatpush1.msra.mxu0 %v419
    %483 = vmatprep.subr.mxu0 %v424
    %484 = vmatpush1.msra.mxu0 %v423
    %485 = vmatprep.subr.mxu0 %v428
    %486 = vmatpush1.msra.mxu0 %v427
    %487 = vmatprep.subr.mxu0 %v432
    %488 = vmatpush1.msra.mxu0 %v431
    %489 = vmatprep.subr.mxu0 %v436
    %490 = vmatpush1.msra.mxu0 %v435
    %491 = vmatprep.subr.mxu0 %v440
    %492 = vmatpush1.msra.mxu0 %v439
    %493 = vmatprep.subr.mxu0 %v444
    %494 = vmatpush1.msra.mxu0 %v443
    %495 = vmatprep.subr.mxu0 %v448
    %496 = vmatpush1.msra.mxu0 %v447
    %497 = vmatprep.subr.mxu0 %v452
    %498 = vmatpush1.msra.mxu0 %v451
    %499 = vmatprep.subr.mxu0 %v456
    %500 = vmatpush1.msra.mxu0 %v455
    %501 = vmatprep.subr.mxu0 %v460
    %502 = vmatpush1.msra.mxu0 %v459
    %503 = vmatprep.subr.mxu0 %v464
    %504 = vmatpush1.msra.mxu0 %v463
    %505 = vmatprep.subr.mxu0 %v468
    %506 = vmatpush1.msra.mxu0 %v467
    %507 = vmatprep.subr.mxu0 %v472
    %508 = vmatpush1.msra.mxu0 %v471
    %509 = vmatprep.subr.mxu0 %v476
    %510 = vmatpush1.msra.mxu0 %v475
    %511 = vmatprep.subr.mxu0 0.0
    %512 = vmatpush1.msra.mxu0 0.0
    %513 = vmatprep.subr.mxu0 0.0
    %514 = vmatpush1.msra.mxu0 0.0
    %515 = vmatprep.subr.mxu0 0.0
    %516 = vmatpush1.msra.mxu0 0.0
    %517 = vmatprep.subr.mxu0 0.0
    %518 = vmatpush1.msra.mxu0 0.0
    %519 = vmatprep.subr.mxu0 0.0
    %520 = vmatpush1.msra.mxu0 0.0
    %521 = vmatprep.subr.mxu0 0.0
    %522 = vmatpush1.msra.mxu0 0.0
    %523 = vmatprep.subr.mxu0 0.0
    %524 = vmatpush1.msra.mxu0 0.0
    %525 = vmatprep.subr.mxu0 0.0
    %526 = vmatpush1.msra.mxu0 0.0
    %527 = vmatprep.subr.mxu0 0.0
    %528 = vmatpush1.msra.mxu0 0.0
    %529 = vmatprep.subr.mxu0 0.0
    %530 = vmatpush1.msra.mxu0 0.0
    %531 = vmatprep.subr.mxu0 0.0
    %532 = vmatpush1.msra.mxu0 0.0
    %533 = vmatprep.subr.mxu0 0.0
    %534 = vmatpush1.msra.mxu0 0.0
    %535 = vmatprep.subr.mxu0 0.0
    %536 = vmatpush1.msra.mxu0 0.0
    %537 = vmatprep.subr.mxu0 0.0
    %538 = vmatpush1.msra.mxu0 0.0
    %539 = vmatprep.subr.mxu0 0.0
    %540 = vmatpush1.msra.mxu0 0.0
    %541 = vmatprep.subr.mxu0 0.0
    %542 = vmatpush1.msra.mxu0 0.0
    %543 = vmatprep.mubr.f32.mxu0 0.0
    %544 = vmatmul.mubr.f32.gmra.mrb[0].mxu0 0.0
    %v545 = vpop.f32.mrb[0].mxu0
    %v546 = vadd.f32 0.0, %v545
    %v547 = vpop.f32.mrb[0].mxu0
    %v548 = vadd.f32 0.0, %v547
    %549 = vdwg.mxu0
    %550 = vmatprep.subr.mxu0 %v418
    %551 = vmatpush1.msra.mxu0 %v417
    %552 = vmatprep.subr.mxu0 %v422
    %553 = vmatpush1.msra.mxu0 %v421
    %554 = vmatprep.subr.mxu0 %v426
    %555 = vmatpush1.msra.mxu0 %v425
    %556 = vmatprep.subr.mxu0 %v430
    %557 = vmatpush1.msra.mxu0 %v429
    %558 = vmatprep.subr.mxu0 %v434
    %559 = vmatpush1.msra.mxu0 %v433
    %560 = vmatprep.subr.mxu0 %v438
    %561 = vmatpush1.msra.mxu0 %v437
    %562 = vmatprep.subr.mxu0 %v442
    %563 = vmatpush1.msra.mxu0 %v441
    %564 = vmatprep.subr.mxu0 %v446
    %565 = vmatpush1.msra.mxu0 %v445
    %566 = vmatprep.subr.mxu0 %v450
    %567 = vmatpush1.msra.mxu0 %v449
    %568 = vmatprep.subr.mxu0 %v454
    %569 = vmatpush1.msra.mxu0 %v453
    %570 = vmatprep.subr.mxu0 %v458
    %571 = vmatpush1.msra.mxu0 %v457
    %572 = vmatprep.subr.mxu0 %v462
    %573 = vmatpush1.msra.mxu0 %v461
    %574 = vmatprep.subr.mxu0 %v466
    %575 = vmatpush1.msra.mxu0 %v465
    %576 = vmatprep.subr.mxu0 %v470
    %577 = vmatpush1.msra.mxu0 %v469
    %578 = vmatprep.subr.mxu0 %v474
    %579 = vmatpush1.msra.mxu0 %v473
    %580 = vmatprep.subr.mxu0 %v478
    %581 = vmatpush1.msra.mxu0 %v477
    %582 = vmatprep.subr.mxu0 0.0
    %583 = vmatpush1.msra.mxu0 0.0
    %584 = vmatprep.subr.mxu0 0.0
    %585 = vmatpush1.msra.mxu0 0.0
    %586 = vmatprep.subr.mxu0 0.0
    %587 = vmatpush1.msra.mxu0 0.0
    %588 = vmatprep.subr.mxu0 0.0
    %589 = vmatpush1.msra.mxu0 0.0
    %590 = vmatprep.subr.mxu0 0.0
    %591 = vmatpush1.msra.mxu0 0.0
    %592 = vmatprep.subr.mxu0 0.0
    %593 = vmatpush1.msra.mxu0 0.0
    %594 = vmatprep.subr.mxu0 0.0
    %595 = vmatpush1.msra.mxu0 0.0
    %596 = vmatprep.subr.mxu0 0.0
    %597 = vmatpush1.msra.mxu0 0.0
    %598 = vmatprep.subr.mxu0 0.0
    %599 = vmatpush1.msra.mxu0 0.0
    %600 = vmatprep.subr.mxu0 0.0
    %601 = vmatpush1.msra.mxu0 0.0
    %602 = vmatprep.subr.mxu0 0.0
    %603 = vmatpush1.msra.mxu0 0.0
    %604 = vmatprep.subr.mxu0 0.0
    %605 = vmatpush1.msra.mxu0 0.0
    %606 = vmatprep.subr.mxu0 0.0
    %607 = vmatpush1.msra.mxu0 0.0
    %608 = vmatprep.subr.mxu0 0.0
    %609 = vmatpush1.msra.mxu0 0.0
    %610 = vmatprep.subr.mxu0 0.0
    %611 = vmatpush1.msra.mxu0 0.0
    %612 = vmatprep.subr.mxu0 0.0
    %613 = vmatpush1.msra.mxu0 0.0
    %614 = vmatprep.mubr.f32.mxu0 0.0
    %615 = vmatmul.mubr.f32.gmra.mrb[0].mxu0 0.0
    %v616 = vpop.f32.mrb[0].mxu0
    %v617 = vadd.f32 0.0, %v616
    %v618 = vpop.f32.mrb[0].mxu0
    %v619 = vadd.f32 0.0, %v618
    %620 = vdwg.mxu0
    %v621 = vadd.f32 %v411, %v546
    %v622 = vadd.f32 %v412, %v548
    %v623 = vadd.f32 %v413, %v617
    %v624 = vadd.f32 %v414, %v619
    %v625 = vxor.u32 %v621, 2147483648
    %v626 = vmul.f32 %v625, 1.442695
    %v627 = vpow.pop %v626
    %v628 = vadd.f32 %v627, 1.0
    %v629 = vrcp.pop %v628
    %v630 = vmul.f32 1.0, %v629
    %v631 = vxor.u32 %v622, 2147483648
    %v632 = vmul.f32 %v631, 1.442695
    %v633 = vpow.pop %v632
    %v634 = vadd.f32 %v633, 1.0
    %v635 = vrcp.pop %v634
    %v636 = vmul.f32 1.0, %v635
    %v637 = vtanh.pop %v623
    %v638 = vxor.u32 %v624, 2147483648
    %v639 = vmul.f32 %v638, 1.442695
    %v640 = vpow.pop %v639
    %v641 = vadd.f32 %v640, 1.0
    %v642 = vrcp.pop %v641
    %v643 = vmul.f32 1.0, %v642
    %v644 = vmul.f32 %v636, 0.0
    %v645 = vmul.f32 %v630, %v637
    %v646 = vadd.f32 %v644, %v645
    %v647 = vtanh.pop %v646
    %v648 = vmul.f32 %v643, %v647
    %s649 = scalar_lea.vmem [#allocation2], 32
    %v650 = vld [vmem:[%s649] sm:$0xff]
    %v651 = vld [vmem:[%s649 + $0x8] sm:$0xff]
    %v652 = vld [vmem:[%s649 + $0x10] sm:$0xff]
    %v653 = vld [vmem:[%s649 + $0x18] sm:$0xff]
    %654 = vmatprep.subr.mxu0 %v416
    %655 = vmatpush1.msra.mxu0 %v415
    %656 = vmatprep.subr.mxu0 %v420
    %657 = vmatpush1.msra.mxu0 %v419
    %658 = vmatprep.subr.mxu0 %v424
    %659 = vmatpush1.msra.mxu0 %v423
    %660 = vmatprep.subr.mxu0 %v428
    %661 = vmatpush1.msra.mxu0 %v427
    %662 = vmatprep.subr.mxu0 %v432
    %663 = vmatpush1.msra.mxu0 %v431
    %664 = vmatprep.subr.mxu0 %v436
    %665 = vmatpush1.msra.mxu0 %v435
    %666 = vmatprep.subr.mxu0 %v440
    %667 = vmatpush1.msra.mxu0 %v439
    %668 = vmatprep.subr.mxu0 %v444
    %669 = vmatpush1.msra.mxu0 %v443
    %670 = vmatprep.subr.mxu0 %v448
    %671 = vmatpush1.msra.mxu0 %v447
    %672 = vmatprep.subr.mxu0 %v452
    %673 = vmatpush1.msra.mxu0 %v451
    %674 = vmatprep.subr.mxu0 %v456
    %675 = vmatpush1.msra.mxu0 %v455
    %676 = vmatprep.subr.mxu0 %v460
    %677 = vmatpush1.msra.mxu0 %v459
    %678 = vmatprep.subr.mxu0 %v464
    %679 = vmatpush1.msra.mxu0 %v463
    %680 = vmatprep.subr.mxu0 %v468
    %681 = vmatpush1.msra.mxu0 %v467
    %682 = vmatprep.subr.mxu0 %v472
    %683 = vmatpush1.msra.mxu0 %v471
    %684 = vmatprep.subr.mxu0 %v476
    %685 = vmatpush1.msra.mxu0 %v475
    %686 = vmatprep.subr.mxu0 0.0
    %687 = vmatpush1.msra.mxu0 0.0
    %688 = vmatprep.subr.mxu0 0.0
    %689 = vmatpush1.msra.mxu0 0.0
    %690 = vmatprep.subr.mxu0 0.0
    %691 = vmatpush1.msra.mxu0 0.0
    %692 = vmatprep.subr.mxu0 0.0
    %693 = vmatpush1.msra.mxu0 0.0
    %694 = vmatprep.subr.mxu0 0.0
    %695 = vmatpush1.msra.mxu0 0.0
    %696 = vmatprep.subr.mxu0 0.0
    %697 = vmatpush1.msra.mxu0 0.0
    %698 = vmatprep.subr.mxu0 0.0
    %699 = vmatpush1.msra.mxu0 0.0
    %700 = vmatprep.subr.mxu0 0.0
    %701 = vmatpush1.msra.mxu0 0.0
    %702 = vmatprep.subr.mxu0 0.0
    %703 = vmatpush1.msra.mxu0 0.0
    %704 = vmatprep.subr.mxu0 0.0
    %705 = vmatpush1.msra.mxu0 0.0
    %706 = vmatprep.subr.mxu0 0.0
    %707 = vmatpush1.msra.mxu0 0.0
    %708 = vmatprep.subr.mxu0 0.0
    %709 = vmatpush1.msra.mxu0 0.0
    %710 = vmatprep.subr.mxu0 0.0
    %711 = vmatpush1.msra.mxu0 0.0
    %712 = vmatprep.subr.mxu0 0.0
    %713 = vmatpush1.msra.mxu0 0.0
    %714 = vmatprep.subr.mxu0 0.0
    %715 = vmatpush1.msra.mxu0 0.0
    %716 = vmatprep.subr.mxu0 0.0
    %717 = vmatpush1.msra.mxu0 0.0
    %718 = vmatprep.mubr.f32.mxu0 0.0
    %719 = vmatmul.mubr.f32.gmra.mrb[0].mxu0 %v648
    %v720 = vpop.f32.mrb[0].mxu0
    %v721 = vadd.f32 0.0, %v720
    %v722 = vpop.f32.mrb[0].mxu0
    %v723 = vadd.f32 0.0, %v722
    %724 = vdwg.mxu0
    %725 = vmatprep.subr.mxu0 %v418
    %726 = vmatpush1.msra.mxu0 %v417
    %727 = vmatprep.subr.mxu0 %v422
    %728 = vmatpush1.msra.mxu0 %v421
    %729 = vmatprep.subr.mxu0 %v426
    %730 = vmatpush1.msra.mxu0 %v425
    %731 = vmatprep.subr.mxu0 %v430
    %732 = vmatpush1.msra.mxu0 %v429
    %733 = vmatprep.subr.mxu0 %v434
    %734 = vmatpush1.msra.mxu0 %v433
    %735 = vmatprep.subr.mxu0 %v438
    %736 = vmatpush1.msra.mxu0 %v437
    %737 = vmatprep.subr.mxu0 %v442
    %738 = vmatpush1.msra.mxu0 %v441
    %739 = vmatprep.subr.mxu0 %v446
    %740 = vmatpush1.msra.mxu0 %v445
    %741 = vmatprep.subr.mxu0 %v450
    %742 = vmatpush1.msra.mxu0 %v449
    %743 = vmatprep.subr.mxu0 %v454
    %744 = vmatpush1.msra.mxu0 %v453
    %745 = vmatprep.subr.mxu0 %v458
    %746 = vmatpush1.msra.mxu0 %v457
    %747 = vmatprep.subr.mxu0 %v462
    %748 = vmatpush1.msra.mxu0 %v461
    %749 = vmatprep.subr.mxu0 %v466
    %750 = vmatpush1.msra.mxu0 %v465
    %751 = vmatprep.subr.mxu0 %v470
    %752 = vmatpush1.msra.mxu0 %v469
    %753 = vmatprep.subr.mxu0 %v474
    %754 = vmatpush1.msra.mxu0 %v473
    %755 = vmatprep.subr.mxu0 %v478
    %756 = vmatpush1.msra.mxu0 %v477
    %757 = vmatprep.subr.mxu0 0.0
    %758 = vmatpush1.msra.mxu0 0.0
    %759 = vmatprep.subr.mxu0 0.0
    %760 = vmatpush1.msra.mxu0 0.0
    %761 = vmatprep.subr.mxu0 0.0
    %762 = vmatpush1.msra.mxu0 0.0
    %763 = vmatprep.subr.mxu0 0.0
    %764 = vmatpush1.msra.mxu0 0.0
    %765 = vmatprep.subr.mxu0 0.0
    %766 = vmatpush1.msra.mxu0 0.0
    %767 = vmatprep.subr.mxu0 0.0
    %768 = vmatpush1.msra.mxu0 0.0
    %769 = vmatprep.subr.mxu0 0.0
    %770 = vmatpush1.msra.mxu0 0.0
    %771 = vmatprep.subr.mxu0 0.0
    %772 = vmatpush1.msra.mxu0 0.0
    %773 = vmatprep.subr.mxu0 0.0
    %774 = vmatpush1.msra.mxu0 0.0
    %775 = vmatprep.subr.mxu0 0.0
    %776 = vmatpush1.msra.mxu0 0.0
    %777 = vmatprep.subr.mxu0 0.0
    %778 = vmatpush1.msra.mxu0 0.0
    %779 = vmatprep.subr.mxu0 0.0
    %780 = vmatpush1.msra.mxu0 0.0
    %781 = vmatprep.subr.mxu0 0.0
    %782 = vmatpush1.msra.mxu0 0.0
    %783 = vmatprep.subr.mxu0 0.0
    %784 = vmatpush1.msra.mxu0 0.0
    %785 = vmatprep.subr.mxu0 0.0
    %786 = vmatpush1.msra.mxu0 0.0
    %787 = vmatprep.subr.mxu0 0.0
    %788 = vmatpush1.msra.mxu0 0.0
    %789 = vmatprep.mubr.f32.mxu0 0.0
    %790 = vmatmul.mubr.f32.gmra.mrb[0].mxu0 %v648
    %v791 = vpop.f32.mrb[0].mxu0
    %v792 = vadd.f32 0.0, %v791
    %v793 = vpop.f32.mrb[0].mxu0
    %v794 = vadd.f32 0.0, %v793
    %795 = vdwg.mxu0
    %v796 = vadd.f32 %v650, %v721
    %v797 = vadd.f32 %v651, %v723
    %v798 = vadd.f32 %v652, %v792
    %v799 = vadd.f32 %v653, %v794
    %v800 = vxor.u32 %v796, 2147483648
    %v801 = vmul.f32 %v800, 1.442695
    %v802 = vpow.pop %v801
    %v803 = vadd.f32 %v802, 1.0
    %v804 = vrcp.pop %v803
    %v805 = vmul.f32 1.0, %v804
    %v806 = vxor.u32 %v797, 2147483648
    %v807 = vmul.f32 %v806, 1.442695
    %v808 = vpow.pop %v807
    %v809 = vadd.f32 %v808, 1.0
    %v810 = vrcp.pop %v809
    %v811 = vmul.f32 1.0, %v810
    %v812 = vtanh.pop %v798
    %v813 = vxor.u32 %v799, 2147483648
    %v814 = vmul.f32 %v813, 1.442695
    %v815 = vpow.pop %v814
    %v816 = vadd.f32 %v815, 1.0
    %v817 = vrcp.pop %v816
    %v818 = vmul.f32 1.0, %v817
    %v819 = vmul.f32 %v811, %v646
    %v820 = vmul.f32 %v805, %v812
    %v821 = vadd.f32 %v819, %v820
    %v822 = vtanh.pop %v821
    %v823 = vmul.f32 %v818, %v822
    %s824 = scalar_lea.vmem [#allocation2], 64
    %v825 = vld [vmem:[%s824] sm:$0xff]
    %v826 = vld [vmem:[%s824 + $0x8] sm:$0xff]
    %v827 = vld [vmem:[%s824 + $0x10] sm:$0xff]
    %v828 = vld [vmem:[%s824 + $0x18] sm:$0xff]
    %829 = vmatprep.subr.mxu0 %v416
    %830 = vmatpush1.msra.mxu0 %v415
    %831 = vmatprep.subr.mxu0 %v420
    %832 = vmatpush1.msra.mxu0 %v419
    %833 = vmatprep.subr.mxu0 %v424
    %834 = vmatpush1.msra.mxu0 %v423
    %835 = vmatprep.subr.mxu0 %v428
    %836 = vmatpush1.msra.mxu0 %v427
    %837 = vmatprep.subr.mxu0 %v432
    %838 = vmatpush1.msra.mxu0 %v431
    %839 = vmatprep.subr.mxu0 %v436
    %840 = vmatpush1.msra.mxu0 %v435
    %841 = vmatprep.subr.mxu0 %v440
    %842 = vmatpush1.msra.mxu0 %v439
    %843 = vmatprep.subr.mxu0 %v444
    %844 = vmatpush1.msra.mxu0 %v443
    %845 = vmatprep.subr.mxu0 %v448
    %846 = vmatpush1.msra.mxu0 %v447
    %847 = vmatprep.subr.mxu0 %v452
    %848 = vmatpush1.msra.mxu0 %v451
    %849 = vmatprep.subr.mxu0 %v456
    %850 = vmatpush1.msra.mxu0 %v455
    %851 = vmatprep.subr.mxu0 %v460
    %852 = vmatpush1.msra.mxu0 %v459
    %853 = vmatprep.subr.mxu0 %v464
    %854 = vmatpush1.msra.mxu0 %v463
    %855 = vmatprep.subr.mxu0 %v468
    %856 = vmatpush1.msra.mxu0 %v467
    %857 = vmatprep.subr.mxu0 %v472
    %858 = vmatpush1.msra.mxu0 %v471
    %859 = vmatprep.subr.mxu0 %v476
    %860 = vmatpush1.msra.mxu0 %v475
    %861 = vmatprep.subr.mxu0 0.0
    %862 = vmatpush1.msra.mxu0 0.0
    %863 = vmatprep.subr.mxu0 0.0
    %864 = vmatpush1.msra.mxu0 0.0
    %865 = vmatprep.subr.mxu0 0.0
    %866 = vmatpush1.msra.mxu0 0.0
    %867 = vmatprep.subr.mxu0 0.0
    %868 = vmatpush1.msra.mxu0 0.0
    %869 = vmatprep.subr.mxu0 0.0
    %870 = vmatpush1.msra.mxu0 0.0
    %871 = vmatprep.subr.mxu0 0.0
    %872 = vmatpush1.msra.mxu0 0.0
    %873 = vmatprep.subr.mxu0 0.0
    %874 = vmatpush1.msra.mxu0 0.0
    %875 = vmatprep.subr.mxu0 0.0
    %876 = vmatpush1.msra.mxu0 0.0
    %877 = vmatprep.subr.mxu0 0.0
    %878 = vmatpush1.msra.mxu0 0.0
    %879 = vmatprep.subr.mxu0 0.0
    %880 = vmatpush1.msra.mxu0 0.0
    %881 = vmatprep.subr.mxu0 0.0
    %882 = vmatpush1.msra.mxu0 0.0
    %883 = vmatprep.subr.mxu0 0.0
    %884 = vmatpush1.msra.mxu0 0.0
    %885 = vmatprep.subr.mxu0 0.0
    %886 = vmatpush1.msra.mxu0 0.0
    %887 = vmatprep.subr.mxu0 0.0
    %888 = vmatpush1.msra.mxu0 0.0
    %889 = vmatprep.subr.mxu0 0.0
    %890 = vmatpush1.msra.mxu0 0.0
    %891 = vmatprep.subr.mxu0 0.0
    %892 = vmatpush1.msra.mxu0 0.0
    %893 = vmatprep.mubr.f32.mxu0 0.0
    %894 = vmatmul.mubr.f32.gmra.mrb[0].mxu0 %v823
    %v895 = vpop.f32.mrb[0].mxu0
    %v896 = vadd.f32 0.0, %v895
    %v897 = vpop.f32.mrb[0].mxu0
    %v898 = vadd.f32 0.0, %v897
    %899 = vdwg.mxu0
    %900 = vmatprep.subr.mxu0 %v418
    %901 = vmatpush1.msra.mxu0 %v417
    %902 = vmatprep.subr.mxu0 %v422
    %903 = vmatpush1.msra.mxu0 %v421
    %904 = vmatprep.subr.mxu0 %v426
    %905 = vmatpush1.msra.mxu0 %v425
    %906 = vmatprep.subr.mxu0 %v430
    %907 = vmatpush1.msra.mxu0 %v429
    %908 = vmatprep.subr.mxu0 %v434
    %909 = vmatpush1.msra.mxu0 %v433
    %910 = vmatprep.subr.mxu0 %v438
    %911 = vmatpush1.msra.mxu0 %v437
    %912 = vmatprep.subr.mxu0 %v442
    %913 = vmatpush1.msra.mxu0 %v441
    %914 = vmatprep.subr.mxu0 %v446
    %915 = vmatpush1.msra.mxu0 %v445
    %916 = vmatprep.subr.mxu0 %v450
    %917 = vmatpush1.msra.mxu0 %v449
    %918 = vmatprep.subr.mxu0 %v454
    %919 = vmatpush1.msra.mxu0 %v453
    %920 = vmatprep.subr.mxu0 %v458
    %921 = vmatpush1.msra.mxu0 %v457
    %922 = vmatprep.subr.mxu0 %v462
    %923 = vmatpush1.msra.mxu0 %v461
    %924 = vmatprep.subr.mxu0 %v466
    %925 = vmatpush1.msra.mxu0 %v465
    %926 = vmatprep.subr.mxu0 %v470
    %927 = vmatpush1.msra.mxu0 %v469
    %928 = vmatprep.subr.mxu0 %v474
    %929 = vmatpush1.msra.mxu0 %v473
    %930 = vmatprep.subr.mxu0 %v478
    %931 = vmatpush1.msra.mxu0 %v477
    %932 = vmatprep.subr.mxu0 0.0
    %933 = vmatpush1.msra.mxu0 0.0
    %934 = vmatprep.subr.mxu0 0.0
    %935 = vmatpush1.msra.mxu0 0.0
    %936 = vmatprep.subr.mxu0 0.0
    %937 = vmatpush1.msra.mxu0 0.0
    %938 = vmatprep.subr.mxu0 0.0
    %939 = vmatpush1.msra.mxu0 0.0
    %940 = vmatprep.subr.mxu0 0.0
    %941 = vmatpush1.msra.mxu0 0.0
    %942 = vmatprep.subr.mxu0 0.0
    %943 = vmatpush1.msra.mxu0 0.0
    %944 = vmatprep.subr.mxu0 0.0
    %945 = vmatpush1.msra.mxu0 0.0
    %946 = vmatprep.subr.mxu0 0.0
    %947 = vmatpush1.msra.mxu0 0.0
    %948 = vmatprep.subr.mxu0 0.0
    %949 = vmatpush1.msra.mxu0 0.0
    %950 = vmatprep.subr.mxu0 0.0
    %951 = vmatpush1.msra.mxu0 0.0
    %952 = vmatprep.subr.mxu0 0.0
    %953 = vmatpush1.msra.mxu0 0.0
    %954 = vmatprep.subr.mxu0 0.0
    %955 = vmatpush1.msra.mxu0 0.0
    %956 = vmatprep.subr.mxu0 0.0
    %957 = vmatpush1.msra.mxu0 0.0
    %958 = vmatprep.subr.mxu0 0.0
    %959 = vmatpush1.msra.mxu0 0.0
    %960 = vmatprep.subr.mxu0 0.0
    %961 = vmatpush1.msra.mxu0 0.0
    %962 = vmatprep.subr.mxu0 0.0
    %963 = vmatpush1.msra.mxu0 0.0
    %964 = vmatprep.mubr.f32.mxu0 0.0
    %965 = vmatmul.mubr.f32.gmra.mrb[0].mxu0 %v823
    %v966 = vpop.f32.mrb[0].mxu0
    %v967 = vadd.f32 0.0, %v966
    %v968 = vpop.f32.mrb[0].mxu0
    %v969 = vadd.f32 0.0, %v968
    %970 = vdwg.mxu0
    %v971 = vadd.f32 %v825, %v896
    %v972 = vadd.f32 %v826, %v898
    %v973 = vadd.f32 %v827, %v967
    %v974 = vadd.f32 %v828, %v969
    %v975 = vxor.u32 %v971, 2147483648
    %v976 = vmul.f32 %v975, 1.442695
    %v977 = vpow.pop %v976
    %v978 = vadd.f32 %v977, 1.0
    %v979 = vrcp.pop %v978
    %v980 = vmul.f32 1.0, %v979
    %v981 = vxor.u32 %v972, 2147483648
    %v982 = vmul.f32 %v981, 1.442695
    %v983 = vpow.pop %v982
    %v984 = vadd.f32 %v983, 1.0
    %v985 = vrcp.pop %v984
    %v986 = vmul.f32 1.0, %v985
    %v987 = vtanh.pop %v973
    %v988 = vxor.u32 %v974, 2147483648
    %v989 = vmul.f32 %v988, 1.442695
    %v990 = vpow.pop %v989
    %v991 = vadd.f32 %v990, 1.0
    %v992 = vrcp.pop %v991
    %v993 = vmul.f32 1.0, %v992
    %v994 = vmul.f32 %v986, %v821
    %v995 = vmul.f32 %v980, %v987
    %v996 = vadd.f32 %v994, %v995
    %v997 = vtanh.pop %v996
    %v998 = vmul.f32 %v993, %v997
    %s999 = scalar_lea.vmem [#allocation2], 96
    %v1000 = vld [vmem:[%s999] sm:$0xff]
    %v1001 = vld [vmem:[%s999 + $0x8] sm:$0xff]
    %v1002 = vld [vmem:[%s999 + $0x10] sm:$0xff]
    %v1003 = vld [vmem:[%s999 + $0x18] sm:$0xff]
    %1004 = vmatprep.subr.mxu0 %v416
    %1005 = vmatpush1.msra.mxu0 %v415
    %1006 = vmatprep.subr.mxu0 %v420
    %1007 = vmatpush1.msra.mxu0 %v419
    %1008 = vmatprep.subr.mxu0 %v424
    %1009 = vmatpush1.msra.mxu0 %v423
    %1010 = vmatprep.subr.mxu0 %v428
    %1011 = vmatpush1.msra.mxu0 %v427
    %1012 = vmatprep.subr.mxu0 %v432
    %1013 = vmatpush1.msra.mxu0 %v431
    %1014 = vmatprep.subr.mxu0 %v436
    %1015 = vmatpush1.msra.mxu0 %v435
    %1016 = vmatprep.subr.mxu0 %v440
    %1017 = vmatpush1.msra.mxu0 %v439
    %1018 = vmatprep.subr.mxu0 %v444
    %1019 = vmatpush1.msra.mxu0 %v443
    %1020 = vmatprep.subr.mxu0 %v448
    %1021 = vmatpush1.msra.mxu0 %v447
    %1022 = vmatprep.subr.mxu0 %v452
    %1023 = vmatpush1.msra.mxu0 %v451
    %1024 = vmatprep.subr.mxu0 %v456
    %1025 = vmatpush1.msra.mxu0 %v455
    %1026 = vmatprep.subr.mxu0 %v460
    %1027 = vmatpush1.msra.mxu0 %v459
    %1028 = vmatprep.subr.mxu0 %v464
    %1029 = vmatpush1.msra.mxu0 %v463
    %1030 = vmatprep.subr.mxu0 %v468
    %1031 = vmatpush1.msra.mxu0 %v467
    %1032 = vmatprep.subr.mxu0 %v472
    %1033 = vmatpush1.msra.mxu0 %v471
    %1034 = vmatprep.subr.mxu0 %v476
    %1035 = vmatpush1.msra.mxu0 %v475
    %1036 = vmatprep.subr.mxu0 0.0
    %1037 = vmatpush1.msra.mxu0 0.0
    %1038 = vmatprep.subr.mxu0 0.0
    %1039 = vmatpush1.msra.mxu0 0.0
    %1040 = vmatprep.subr.mxu0 0.0
    %1041 = vmatpush1.msra.mxu0 0.0
    %1042 = vmatprep.subr.mxu0 0.0
    %1043 = vmatpush1.msra.mxu0 0.0
    %1044 = vmatprep.subr.mxu0 0.0
    %1045 = vmatpush1.msra.mxu0 0.0
    %1046 = vmatprep.subr.mxu0 0.0
    %1047 = vmatpush1.msra.mxu0 0.0
    %1048 = vmatprep.subr.mxu0 0.0
    %1049 = vmatpush1.msra.mxu0 0.0
    %1050 = vmatprep.subr.mxu0 0.0
    %1051 = vmatpush1.msra.mxu0 0.0
    %1052 = vmatprep.subr.mxu0 0.0
    %1053 = vmatpush1.msra.mxu0 0.0
    %1054 = vmatprep.subr.mxu0 0.0
    %1055 = vmatpush1.msra.mxu0 0.0
    %1056 = vmatprep.subr.mxu0 0.0
    %1057 = vmatpush1.msra.mxu0 0.0
    %1058 = vmatprep.subr.mxu0 0.0
    %1059 = vmatpush1.msra.mxu0 0.0
    %1060 = vmatprep.subr.mxu0 0.0
    %1061 = vmatpush1.msra.mxu0 0.0
    %1062 = vmatprep.subr.mxu0 0.0
    %1063 = vmatpush1.msra.mxu0 0.0
    %1064 = vmatprep.subr.mxu0 0.0
    %1065 = vmatpush1.msra.mxu0 0.0
    %1066 = vmatprep.subr.mxu0 0.0
    %1067 = vmatpush1.msra.mxu0 0.0
    %1068 = vmatprep.mubr.f32.mxu0 0.0
    %1069 = vmatmul.mubr.f32.gmra.mrb[0].mxu0 %v998
    %v1070 = vpop.f32.mrb[0].mxu0
    %v1071 = vadd.f32 0.0, %v1070
    %v1072 = vpop.f32.mrb[0].mxu0
    %v1073 = vadd.f32 0.0, %v1072
    %1074 = vdwg.mxu0
    %1075 = vmatprep.subr.mxu0 %v418
    %1076 = vmatpush1.msra.mxu0 %v417
    %1077 = vmatprep.subr.mxu0 %v422
    %1078 = vmatpush1.msra.mxu0 %v421
    %1079 = vmatprep.subr.mxu0 %v426
    %1080 = vmatpush1.msra.mxu0 %v425
    %1081 = vmatprep.subr.mxu0 %v430
    %1082 = vmatpush1.msra.mxu0 %v429
    %1083 = vmatprep.subr.mxu0 %v434
    %1084 = vmatpush1.msra.mxu0 %v433
    %1085 = vmatprep.subr.mxu0 %v438
    %1086 = vmatpush1.msra.mxu0 %v437
    %1087 = vmatprep.subr.mxu0 %v442
    %1088 = vmatpush1.msra.mxu0 %v441
    %1089 = vmatprep.subr.mxu0 %v446
    %1090 = vmatpush1.msra.mxu0 %v445
    %1091 = vmatprep.subr.mxu0 %v450
    %1092 = vmatpush1.msra.mxu0 %v449
    %1093 = vmatprep.subr.mxu0 %v454
    %1094 = vmatpush1.msra.mxu0 %v453
    %1095 = vmatprep.subr.mxu0 %v458
    %1096 = vmatpush1.msra.mxu0 %v457
    %1097 = vmatprep.subr.mxu0 %v462
    %1098 = vmatpush1.msra.mxu0 %v461
    %1099 = vmatprep.subr.mxu0 %v466
    %1100 = vmatpush1.msra.mxu0 %v465
    %1101 = vmatprep.subr.mxu0 %v470
    %1102 = vmatpush1.msra.mxu0 %v469
    %1103 = vmatprep.subr.mxu0 %v474
    %1104 = vmatpush1.msra.mxu0 %v473
    %1105 = vmatprep.subr.mxu0 %v478
    %1106 = vmatpush1.msra.mxu0 %v477
    %1107 = vmatprep.subr.mxu0 0.0
    %1108 = vmatpush1.msra.mxu0 0.0
    %1109 = vmatprep.subr.mxu0 0.0
    %1110 = vmatpush1.msra.mxu0 0.0
    %1111 = vmatprep.subr.mxu0 0.0
    %1112 = vmatpush1.msra.mxu0 0.0
    %1113 = vmatprep.subr.mxu0 0.0
    %1114 = vmatpush1.msra.mxu0 0.0
    %1115 = vmatprep.subr.mxu0 0.0
    %1116 = vmatpush1.msra.mxu0 0.0
    %1117 = vmatprep.subr.mxu0 0.0
    %1118 = vmatpush1.msra.mxu0 0.0
    %1119 = vmatprep.subr.mxu0 0.0
    %1120 = vmatpush1.msra.mxu0 0.0
    %1121 = vmatprep.subr.mxu0 0.0
    %1122 = vmatpush1.msra.mxu0 0.0
    %1123 = vmatprep.subr.mxu0 0.0
    %1124 = vmatpush1.msra.mxu0 0.0
    %1125 = vmatprep.subr.mxu0 0.0
    %1126 = vmatpush1.msra.mxu0 0.0
    %1127 = vmatprep.subr.mxu0 0.0
    %1128 = vmatpush1.msra.mxu0 0.0
    %1129 = vmatprep.subr.mxu0 0.0
    %1130 = vmatpush1.msra.mxu0 0.0
    %1131 = vmatprep.subr.mxu0 0.0
    %1132 = vmatpush1.msra.mxu0 0.0
    %1133 = vmatprep.subr.mxu0 0.0
    %1134 = vmatpush1.msra.mxu0 0.0
    %1135 = vmatprep.subr.mxu0 0.0
    %1136 = vmatpush1.msra.mxu0 0.0
    %1137 = vmatprep.subr.mxu0 0.0
    %1138 = vmatpush1.msra.mxu0 0.0
    %1139 = vmatprep.mubr.f32.mxu0 0.0
    %1140 = vmatmul.mubr.f32.gmra.mrb[0].mxu0 %v998
    %v1141 = vpop.f32.mrb[0].mxu0
    %v1142 = vadd.f32 0.0, %v1141
    %v1143 = vpop.f32.mrb[0].mxu0
    %v1144 = vadd.f32 0.0, %v1143
    %1145 = vdwg.mxu0
    %v1146 = vadd.f32 %v1000, %v1071
    %v1147 = vadd.f32 %v1001, %v1073
    %v1148 = vadd.f32 %v1002, %v1142
    %v1149 = vadd.f32 %v1003, %v1144
    %v1150 = vxor.u32 %v1146, 2147483648
    %v1151 = vmul.f32 %v1150, 1.442695
    %v1152 = vpow.pop %v1151
    %v1153 = vadd.f32 %v1152, 1.0
    %v1154 = vrcp.pop %v1153
    %v1155 = vmul.f32 1.0, %v1154
    %v1156 = vxor.u32 %v1147, 2147483648
    %v1157 = vmul.f32 %v1156, 1.442695
    %v1158 = vpow.pop %v1157
    %v1159 = vadd.f32 %v1158, 1.0
    %v1160 = vrcp.pop %v1159
    %v1161 = vmul.f32 1.0, %v1160
    %v1162 = vtanh.pop %v1148
    %v1163 = vxor.u32 %v1149, 2147483648
    %v1164 = vmul.f32 %v1163, 1.442695
    %v1165 = vpow.pop %v1164
    %v1166 = vadd.f32 %v1165, 1.0
    %v1167 = vrcp.pop %v1166
    %v1168 = vmul.f32 1.0, %v1167
    %v1169 = vmul.f32 %v1161, %v996
    %v1170 = vmul.f32 %v1155, %v1162
    %v1171 = vadd.f32 %v1169, %v1170
    %v1172 = vtanh.pop %v1171
    %v1173 = vmul.f32 %v1168, %v1172
    %s1174 = scalar_lea.vmem [#allocation2], 128
    %v1175 = vld [vmem:[%s1174] sm:$0xff]
    %v1176 = vld [vmem:[%s1174 + $0x8] sm:$0xff]
    %v1177 = vld [vmem:[%s1174 + $0x10] sm:$0xff]
    %v1178 = vld [vmem:[%s1174 + $0x18] sm:$0xff]
    %1179 = vmatprep.subr.mxu0 %v416
    %1180 = vmatpush1.msra.mxu0 %v415
    %1181 = vmatprep.subr.mxu0 %v420
    %1182 = vmatpush1.msra.mxu0 %v419
    %1183 = vmatprep.subr.mxu0 %v424
    %1184 = vmatpush1.msra.mxu0 %v423
    %1185 = vmatprep.subr.mxu0 %v428
    %1186 = vmatpush1.msra.mxu0 %v427
    %1187 = vmatprep.subr.mxu0 %v432
    %1188 = vmatpush1.msra.mxu0 %v431
    %1189 = vmatprep.subr.mxu0 %v436
    %1190 = vmatpush1.msra.mxu0 %v435
    %1191 = vmatprep.subr.mxu0 %v440
    %1192 = vmatpush1.msra.mxu0 %v439
    %1193 = vmatprep.subr.mxu0 %v444
    %1194 = vmatpush1.msra.mxu0 %v443
    %1195 = vmatprep.subr.mxu0 %v448
    %1196 = vmatpush1.msra.mxu0 %v447
    %1197 = vmatprep.subr.mxu0 %v452
    %1198 = vmatpush1.msra.mxu0 %v451
    %1199 = vmatprep.subr.mxu0 %v456
    %1200 = vmatpush1.msra.mxu0 %v455
    %1201 = vmatprep.subr.mxu0 %v460
    %1202 = vmatpush1.msra.mxu0 %v459
    %1203 = vmatprep.subr.mxu0 %v464
    %1204 = vmatpush1.msra.mxu0 %v463
    %1205 = vmatprep.subr.mxu0 %v468
    %1206 = vmatpush1.msra.mxu0 %v467
    %1207 = vmatprep.subr.mxu0 %v472
    %1208 = vmatpush1.msra.mxu0 %v471
    %1209 = vmatprep.subr.mxu0 %v476
    %1210 = vmatpush1.msra.mxu0 %v475
    %1211 = vmatprep.subr.mxu0 0.0
    %1212 = vmatpush1.msra.mxu0 0.0
    %1213 = vmatprep.subr.mxu0 0.0
    %1214 = vmatpush1.msra.mxu0 0.0
    %1215 = vmatprep.subr.mxu0 0.0
    %1216 = vmatpush1.msra.mxu0 0.0
    %1217 = vmatprep.subr.mxu0 0.0
    %1218 = vmatpush1.msra.mxu0 0.0
    %1219 = vmatprep.subr.mxu0 0.0
    %1220 = vmatpush1.msra.mxu0 0.0
    %1221 = vmatprep.subr.mxu0 0.0
    %1222 = vmatpush1.msra.mxu0 0.0
    %1223 = vmatprep.subr.mxu0 0.0
    %1224 = vmatpush1.msra.mxu0 0.0
    %1225 = vmatprep.subr.mxu0 0.0
    %1226 = vmatpush1.msra.mxu0 0.0
    %1227 = vmatprep.subr.mxu0 0.0
    %1228 = vmatpush1.msra.mxu0 0.0
    %1229 = vmatprep.subr.mxu0 0.0
    %1230 = vmatpush1.msra.mxu0 0.0
    %1231 = vmatprep.subr.mxu0 0.0
    %1232 = vmatpush1.msra.mxu0 0.0
    %1233 = vmatprep.subr.mxu0 0.0
    %1234 = vmatpush1.msra.mxu0 0.0
    %1235 = vmatprep.subr.mxu0 0.0
    %1236 = vmatpush1.msra.mxu0 0.0
    %1237 = vmatprep.subr.mxu0 0.0
    %1238 = vmatpush1.msra.mxu0 0.0
    %1239 = vmatprep.subr.mxu0 0.0
    %1240 = vmatpush1.msra.mxu0 0.0
    %1241 = vmatprep.subr.mxu0 0.0
    %1242 = vmatpush1.msra.mxu0 0.0
    %1243 = vmatprep.mubr.f32.mxu0 0.0
    %1244 = vmatmul.mubr.f32.gmra.mrb[0].mxu0 %v1173
    %v1245 = vpop.f32.mrb[0].mxu0
    %v1246 = vadd.f32 0.0, %v1245
    %v1247 = vpop.f32.mrb[0].mxu0
    %v1248 = vadd.f32 0.0, %v1247
    %1249 = vdwg.mxu0
    %1250 = vmatprep.subr.mxu0 %v418
    %1251 = vmatpush1.msra.mxu0 %v417
    %1252 = vmatprep.subr.mxu0 %v422
    %1253 = vmatpush1.msra.mxu0 %v421
    %1254 = vmatprep.subr.mxu0 %v426
    %1255 = vmatpush1.msra.mxu0 %v425
    %1256 = vmatprep.subr.mxu0 %v430
    %1257 = vmatpush1.msra.mxu0 %v429
    %1258 = vmatprep.subr.mxu0 %v434
    %1259 = vmatpush1.msra.mxu0 %v433
    %1260 = vmatprep.subr.mxu0 %v438
    %1261 = vmatpush1.msra.mxu0 %v437
    %1262 = vmatprep.subr.mxu0 %v442
    %1263 = vmatpush1.msra.mxu0 %v441
    %1264 = vmatprep.subr.mxu0 %v446
    %1265 = vmatpush1.msra.mxu0 %v445
    %1266 = vmatprep.subr.mxu0 %v450
    %1267 = vmatpush1.msra.mxu0 %v449
    %1268 = vmatprep.subr.mxu0 %v454
    %1269 = vmatpush1.msra.mxu0 %v453
    %1270 = vmatprep.subr.mxu0 %v458
    %1271 = vmatpush1.msra.mxu0 %v457
    %1272 = vmatprep.subr.mxu0 %v462
    %1273 = vmatpush1.msra.mxu0 %v461
    %1274 = vmatprep.subr.mxu0 %v466
    %1275 = vmatpush1.msra.mxu0 %v465
    %1276 = vmatprep.subr.mxu0 %v470
    %1277 = vmatpush1.msra.mxu0 %v469
    %1278 = vmatprep.subr.mxu0 %v474
    %1279 = vmatpush1.msra.mxu0 %v473
    %1280 = vmatprep.subr.mxu0 %v478
    %1281 = vmatpush1.msra.mxu0 %v477
    %1282 = vmatprep.subr.mxu0 0.0
    %1283 = vmatpush1.msra.mxu0 0.0
    %1284 = vmatprep.subr.mxu0 0.0
    %1285 = vmatpush1.msra.mxu0 0.0
    %1286 = vmatprep.subr.mxu0 0.0
    %1287 = vmatpush1.msra.mxu0 0.0
    %1288 = vmatprep.subr.mxu0 0.0
    %1289 = vmatpush1.msra.mxu0 0.0
    %1290 = vmatprep.subr.mxu0 0.0
    %1291 = vmatpush1.msra.mxu0 0.0
    %1292 = vmatprep.subr.mxu0 0.0
    %1293 = vmatpush1.msra.mxu0 0.0
    %1294 = vmatprep.subr.mxu0 0.0
    %1295 = vmatpush1.msra.mxu0 0.0
    %1296 = vmatprep.subr.mxu0 0.0
    %1297 = vmatpush1.msra.mxu0 0.0
    %1298 = vmatprep.subr.mxu0 0.0
    %1299 = vmatpush1.msra.mxu0 0.0
    %1300 = vmatprep.subr.mxu0 0.0
    %1301 = vmatpush1.msra.mxu0 0.0
    %1302 = vmatprep.subr.mxu0 0.0
    %1303 = vmatpush1.msra.mxu0 0.0
    %1304 = vmatprep.subr.mxu0 0.0
    %1305 = vmatpush1.msra.mxu0 0.0
    %1306 = vmatprep.subr.mxu0 0.0
    %1307 = vmatpush1.msra.mxu0 0.0
    %1308 = vmatprep.subr.mxu0 0.0
    %1309 = vmatpush1.msra.mxu0 0.0
    %1310 = vmatprep.subr.mxu0 0.0
    %1311 = vmatpush1.msra.mxu0 0.0
    %1312 = vmatprep.subr.mxu0 0.0
    %1313 = vmatpush1.msra.mxu0 0.0
    %1314 = vmatprep.mubr.f32.mxu0 0.0
    %1315 = vmatmul.mubr.f32.gmra.mrb[0].mxu0 %v1173
    %v1316 = vpop.f32.mrb[0].mxu0
    %v1317 = vadd.f32 0.0, %v1316
    %v1318 = vpop.f32.mrb[0].mxu0
    %v1319 = vadd.f32 0.0, %v1318
    %1320 = vdwg.mxu0
    %v1321 = vadd.f32 %v1175, %v1246
    %v1322 = vadd.f32 %v1176, %v1248
    %v1323 = vadd.f32 %v1177, %v1317
    %v1324 = vadd.f32 %v1178, %v1319
    %v1325 = vxor.u32 %v1321, 2147483648
    %v1326 = vmul.f32 %v1325, 1.442695
    %v1327 = vpow.pop %v1326
    %v1328 = vadd.f32 %v1327, 1.0
    %v1329 = vrcp.pop %v1328
    %v1330 = vmul.f32 1.0, %v1329
    %v1331 = vxor.u32 %v1322, 2147483648
    %v1332 = vmul.f32 %v1331, 1.442695
    %v1333 = vpow.pop %v1332
    %v1334 = vadd.f32 %v1333, 1.0
    %v1335 = vrcp.pop %v1334
    %v1336 = vmul.f32 1.0, %v1335
    %v1337 = vtanh.pop %v1323
    %v1338 = vxor.u32 %v1324, 2147483648
    %v1339 = vmul.f32 %v1338, 1.442695
    %v1340 = vpow.pop %v1339
    %v1341 = vadd.f32 %v1340, 1.0
    %v1342 = vrcp.pop %v1341
    %v1343 = vmul.f32 1.0, %v1342
    %v1344 = vmul.f32 %v1336, %v1171
    %v1345 = vmul.f32 %v1330, %v1337
    %v1346 = vadd.f32 %v1344, %v1345
    %v1347 = vtanh.pop %v1346
    %v1348 = vmul.f32 %v1343, %v1347
    %s1349 = scalar_lea.vmem [#allocation2], 160
    %v1350 = vld [vmem:[%s1349] sm:$0xff]
    %v1351 = vld [vmem:[%s1349 + $0x8] sm:$0xff]
    %v1352 = vld [vmem:[%s1349 + $0x10] sm:$0xff]
    %v1353 = vld [vmem:[%s1349 + $0x18] sm:$0xff]
    %1354 = vmatprep.subr.mxu0 %v416
    %1355 = vmatpush1.msra.mxu0 %v415
    %1356 = vmatprep.subr.mxu0 %v420
    %1357 = vmatpush1.msra.mxu0 %v419
    %1358 = vmatprep.subr.mxu0 %v424
    %1359 = vmatpush1.msra.mxu0 %v423
    %1360 = vmatprep.subr.mxu0 %v428
    %1361 = vmatpush1.msra.mxu0 %v427
    %1362 = vmatprep.subr.mxu0 %v432
    %1363 = vmatpush1.msra.mxu0 %v431
    %1364 = vmatprep.subr.mxu0 %v436
    %1365 = vmatpush1.msra.mxu0 %v435
    %1366 = vmatprep.subr.mxu0 %v440
    %1367 = vmatpush1.msra.mxu0 %v439
    %1368 = vmatprep.subr.mxu0 %v444
    %1369 = vmatpush1.msra.mxu0 %v443
    %1370 = vmatprep.subr.mxu0 %v448
    %1371 = vmatpush1.msra.mxu0 %v447
    %1372 = vmatprep.subr.mxu0 %v452
    %1373 = vmatpush1.msra.mxu0 %v451
    %1374 = vmatprep.subr.mxu0 %v456
    %1375 = vmatpush1.msra.mxu0 %v455
    %1376 = vmatprep.subr.mxu0 %v460
    %1377 = vmatpush1.msra.mxu0 %v459
    %1378 = vmatprep.subr.mxu0 %v464
    %1379 = vmatpush1.msra.mxu0 %v463
    %1380 = vmatprep.subr.mxu0 %v468
    %1381 = vmatpush1.msra.mxu0 %v467
    %1382 = vmatprep.subr.mxu0 %v472
    %1383 = vmatpush1.msra.mxu0 %v471
    %1384 = vmatprep.subr.mxu0 %v476
    %1385 = vmatpush1.msra.mxu0 %v475
    %1386 = vmatprep.subr.mxu0 0.0
    %1387 = vmatpush1.msra.mxu0 0.0
    %1388 = vmatprep.subr.mxu0 0.0
    %1389 = vmatpush1.msra.mxu0 0.0
    %1390 = vmatprep.subr.mxu0 0.0
    %1391 = vmatpush1.msra.mxu0 0.0
    %1392 = vmatprep.subr.mxu0 0.0
    %1393 = vmatpush1.msra.mxu0 0.0
    %1394 = vmatprep.subr.mxu0 0.0
    %1395 = vmatpush1.msra.mxu0 0.0
    %1396 = vmatprep.subr.mxu0 0.0
    %1397 = vmatpush1.msra.mxu0 0.0
    %1398 = vmatprep.subr.mxu0 0.0
    %1399 = vmatpush1.msra.mxu0 0.0
    %1400 = vmatprep.subr.mxu0 0.0
    %1401 = vmatpush1.msra.mxu0 0.0
    %1402 = vmatprep.subr.mxu0 0.0
    %1403 = vmatpush1.msra.mxu0 0.0
    %1404 = vmatprep.subr.mxu0 0.0
    %1405 = vmatpush1.msra.mxu0 0.0
    %1406 = vmatprep.subr.mxu0 0.0
    %1407 = vmatpush1.msra.mxu0 0.0
    %1408 = vmatprep.subr.mxu0 0.0
    %1409 = vmatpush1.msra.mxu0 0.0
    %1410 = vmatprep.subr.mxu0 0.0
    %1411 = vmatpush1.msra.mxu0 0.0
    %1412 = vmatprep.subr.mxu0 0.0
    %1413 = vmatpush1.msra.mxu0 0.0
    %1414 = vmatprep.subr.mxu0 0.0
    %1415 = vmatpush1.msra.mxu0 0.0
    %1416 = vmatprep.subr.mxu0 0.0
    %1417 = vmatpush1.msra.mxu0 0.0
    %1418 = vmatprep.mubr.f32.mxu0 0.0
    %1419 = vmatmul.mubr.f32.gmra.mrb[0].mxu0 %v1348
    %v1420 = vpop.f32.mrb[0].mxu0
    %v1421 = vadd.f32 0.0, %v1420
    %v1422 = vpop.f32.mrb[0].mxu0
    %v1423 = vadd.f32 0.0, %v1422
    %1424 = vdwg.mxu0
    %1425 = vmatprep.subr.mxu0 %v418
    %1426 = vmatpush1.msra.mxu0 %v417
    %1427 = vmatprep.subr.mxu0 %v422
    %1428 = vmatpush1.msra.mxu0 %v421
    %1429 = vmatprep.subr.mxu0 %v426
    %1430 = vmatpush1.msra.mxu0 %v425
    %1431 = vmatprep.subr.mxu0 %v430
    %1432 = vmatpush1.msra.mxu0 %v429
    %1433 = vmatprep.subr.mxu0 %v434
    %1434 = vmatpush1.msra.mxu0 %v433
    %1435 = vmatprep.subr.mxu0 %v438
    %1436 = vmatpush1.msra.mxu0 %v437
    %1437 = vmatprep.subr.mxu0 %v442
    %1438 = vmatpush1.msra.mxu0 %v441
    %1439 = vmatprep.subr.mxu0 %v446
    %1440 = vmatpush1.msra.mxu0 %v445
    %1441 = vmatprep.subr.mxu0 %v450
    %1442 = vmatpush1.msra.mxu0 %v449
    %1443 = vmatprep.subr.mxu0 %v454
    %1444 = vmatpush1.msra.mxu0 %v453
    %1445 = vmatprep.subr.mxu0 %v458
    %1446 = vmatpush1.msra.mxu0 %v457
    %1447 = vmatprep.subr.mxu0 %v462
    %1448 = vmatpush1.msra.mxu0 %v461
    %1449 = vmatprep.subr.mxu0 %v466
    %1450 = vmatpush1.msra.mxu0 %v465
    %1451 = vmatprep.subr.mxu0 %v470
    %1452 = vmatpush1.msra.mxu0 %v469
    %1453 = vmatprep.subr.mxu0 %v474
    %1454 = vmatpush1.msra.mxu0 %v473
    %1455 = vmatprep.subr.mxu0 %v478
    %1456 = vmatpush1.msra.mxu0 %v477
    %1457 = vmatprep.subr.mxu0 0.0
    %1458 = vmatpush1.msra.mxu0 0.0
    %1459 = vmatprep.subr.mxu0 0.0
    %1460 = vmatpush1.msra.mxu0 0.0
    %1461 = vmatprep.subr.mxu0 0.0
    %1462 = vmatpush1.msra.mxu0 0.0
    %1463 = vmatprep.subr.mxu0 0.0
    %1464 = vmatpush1.msra.mxu0 0.0
    %1465 = vmatprep.subr.mxu0 0.0
    %1466 = vmatpush1.msra.mxu0 0.0
    %1467 = vmatprep.subr.mxu0 0.0
    %1468 = vmatpush1.msra.mxu0 0.0
    %1469 = vmatprep.subr.mxu0 0.0
    %1470 = vmatpush1.msra.mxu0 0.0
    %1471 = vmatprep.subr.mxu0 0.0
    %1472 = vmatpush1.msra.mxu0 0.0
    %1473 = vmatprep.subr.mxu0 0.0
    %1474 = vmatpush1.msra.mxu0 0.0
    %1475 = vmatprep.subr.mxu0 0.0
    %1476 = vmatpush1.msra.mxu0 0.0
    %1477 = vmatprep.subr.mxu0 0.0
    %1478 = vmatpush1.msra.mxu0 0.0
    %1479 = vmatprep.subr.mxu0 0.0
    %1480 = vmatpush1.msra.mxu0 0.0
    %1481 = vmatprep.subr.mxu0 0.0
    %1482 = vmatpush1.msra.mxu0 0.0
    %1483 = vmatprep.subr.mxu0 0.0
    %1484 = vmatpush1.msra.mxu0 0.0
    %1485 = vmatprep.subr.mxu0 0.0
    %1486 = vmatpush1.msra.mxu0 0.0
    %1487 = vmatprep.subr.mxu0 0.0
    %1488 = vmatpush1.msra.mxu0 0.0
    %1489 = vmatprep.mubr.f32.mxu0 0.0
    %1490 = vmatmul.mubr.f32.gmra.mrb[0].mxu0 %v1348
    %v1491 = vpop.f32.mrb[0].mxu0
    %v1492 = vadd.f32 0.0, %v1491
    %v1493 = vpop.f32.mrb[0].mxu0
    %v1494 = vadd.f32 0.0, %v1493
    %1495 = vdwg.mxu0
    %v1496 = vadd.f32 %v1350, %v1421
    %v1497 = vadd.f32 %v1351, %v1423
    %v1498 = vadd.f32 %v1352, %v1492
    %v1499 = vadd.f32 %v1353, %v1494
    %v1500 = vxor.u32 %v1496, 2147483648
    %v1501 = vmul.f32 %v1500, 1.442695
    %v1502 = vpow.pop %v1501
    %v1503 = vadd.f32 %v1502, 1.0
    %v1504 = vrcp.pop %v1503
    %v1505 = vmul.f32 1.0, %v1504
    %v1506 = vxor.u32 %v1497, 2147483648
    %v1507 = vmul.f32 %v1506, 1.442695
    %v1508 = vpow.pop %v1507
    %v1509 = vadd.f32 %v1508, 1.0
    %v1510 = vrcp.pop %v1509
    %v1511 = vmul.f32 1.0, %v1510
    %v1512 = vtanh.pop %v1498
    %v1513 = vxor.u32 %v1499, 2147483648
    %v1514 = vmul.f32 %v1513, 1.442695
    %v1515 = vpow.pop %v1514
    %v1516 = vadd.f32 %v1515, 1.0
    %v1517 = vrcp.pop %v1516
    %v1518 = vmul.f32 1.0, %v1517
    %v1519 = vmul.f32 %v1511, %v1346
    %v1520 = vmul.f32 %v1505, %v1512
    %v1521 = vadd.f32 %v1519, %v1520
    %v1522 = vtanh.pop %v1521
    %v1523 = vmul.f32 %v1518, %v1522
    %s1524 = scalar_lea.vmem [#allocation2], 192
    %v1525 = vld [vmem:[%s1524] sm:$0xff]
    %v1526 = vld [vmem:[%s1524 + $0x8] sm:$0xff]
    %v1527 = vld [vmem:[%s1524 + $0x10] sm:$0xff]
    %v1528 = vld [vmem:[%s1524 + $0x18] sm:$0xff]
    %1529 = vmatprep.subr.mxu0 %v416
    %1530 = vmatpush1.msra.mxu0 %v415
    %1531 = vmatprep.subr.mxu0 %v420
    %1532 = vmatpush1.msra.mxu0 %v419
    %1533 = vmatprep.subr.mxu0 %v424
    %1534 = vmatpush1.msra.mxu0 %v423
    %1535 = vmatprep.subr.mxu0 %v428
    %1536 = vmatpush1.msra.mxu0 %v427
    %1537 = vmatprep.subr.mxu0 %v432
    %1538 = vmatpush1.msra.mxu0 %v431
    %1539 = vmatprep.subr.mxu0 %v436
    %1540 = vmatpush1.msra.mxu0 %v435
    %1541 = vmatprep.subr.mxu0 %v440
    %1542 = vmatpush1.msra.mxu0 %v439
    %1543 = vmatprep.subr.mxu0 %v444
    %1544 = vmatpush1.msra.mxu0 %v443
    %1545 = vmatprep.subr.mxu0 %v448
    %1546 = vmatpush1.msra.mxu0 %v447
    %1547 = vmatprep.subr.mxu0 %v452
    %1548 = vmatpush1.msra.mxu0 %v451
    %1549 = vmatprep.subr.mxu0 %v456
    %1550 = vmatpush1.msra.mxu0 %v455
    %1551 = vmatprep.subr.mxu0 %v460
    %1552 = vmatpush1.msra.mxu0 %v459
    %1553 = vmatprep.subr.mxu0 %v464
    %1554 = vmatpush1.msra.mxu0 %v463
    %1555 = vmatprep.subr.mxu0 %v468
    %1556 = vmatpush1.msra.mxu0 %v467
    %1557 = vmatprep.subr.mxu0 %v472
    %1558 = vmatpush1.msra.mxu0 %v471
    %1559 = vmatprep.subr.mxu0 %v476
    %1560 = vmatpush1.msra.mxu0 %v475
    %1561 = vmatprep.subr.mxu0 0.0
    %1562 = vmatpush1.msra.mxu0 0.0
    %1563 = vmatprep.subr.mxu0 0.0
    %1564 = vmatpush1.msra.mxu0 0.0
    %1565 = vmatprep.subr.mxu0 0.0
    %1566 = vmatpush1.msra.mxu0 0.0
    %1567 = vmatprep.subr.mxu0 0.0
    %1568 = vmatpush1.msra.mxu0 0.0
    %1569 = vmatprep.subr.mxu0 0.0
    %1570 = vmatpush1.msra.mxu0 0.0
    %1571 = vmatprep.subr.mxu0 0.0
    %1572 = vmatpush1.msra.mxu0 0.0
    %1573 = vmatprep.subr.mxu0 0.0
    %1574 = vmatpush1.msra.mxu0 0.0
    %1575 = vmatprep.subr.mxu0 0.0
    %1576 = vmatpush1.msra.mxu0 0.0
    %1577 = vmatprep.subr.mxu0 0.0
    %1578 = vmatpush1.msra.mxu0 0.0
    %1579 = vmatprep.subr.mxu0 0.0
    %1580 = vmatpush1.msra.mxu0 0.0
    %1581 = vmatprep.subr.mxu0 0.0
    %1582 = vmatpush1.msra.mxu0 0.0
    %1583 = vmatprep.subr.mxu0 0.0
    %1584 = vmatpush1.msra.mxu0 0.0
    %1585 = vmatprep.subr.mxu0 0.0
    %1586 = vmatpush1.msra.mxu0 0.0
    %1587 = vmatprep.subr.mxu0 0.0
    %1588 = vmatpush1.msra.mxu0 0.0
    %1589 = vmatprep.subr.mxu0 0.0
    %1590 = vmatpush1.msra.mxu0 0.0
    %1591 = vmatprep.subr.mxu0 0.0
    %1592 = vmatpush1.msra.mxu0 0.0
    %1593 = vmatprep.mubr.f32.mxu0 0.0
    %1594 = vmatmul.mubr.f32.gmra.mrb[0].mxu0 %v1523
    %v1595 = vpop.f32.mrb[0].mxu0
    %v1596 = vadd.f32 0.0, %v1595
    %v1597 = vpop.f32.mrb[0].mxu0
    %v1598 = vadd.f32 0.0, %v1597
    %1599 = vdwg.mxu0
    %1600 = vmatprep.subr.mxu0 %v418
    %1601 = vmatpush1.msra.mxu0 %v417
    %1602 = vmatprep.subr.mxu0 %v422
    %1603 = vmatpush1.msra.mxu0 %v421
    %1604 = vmatprep.subr.mxu0 %v426
    %1605 = vmatpush1.msra.mxu0 %v425
    %1606 = vmatprep.subr.mxu0 %v430
    %1607 = vmatpush1.msra.mxu0 %v429
    %1608 = vmatprep.subr.mxu0 %v434
    %1609 = vmatpush1.msra.mxu0 %v433
    %1610 = vmatprep.subr.mxu0 %v438
    %1611 = vmatpush1.msra.mxu0 %v437
    %1612 = vmatprep.subr.mxu0 %v442
    %1613 = vmatpush1.msra.mxu0 %v441
    %1614 = vmatprep.subr.mxu0 %v446
    %1615 = vmatpush1.msra.mxu0 %v445
    %1616 = vmatprep.subr.mxu0 %v450
    %1617 = vmatpush1.msra.mxu0 %v449
    %1618 = vmatprep.subr.mxu0 %v454
    %1619 = vmatpush1.msra.mxu0 %v453
    %1620 = vmatprep.subr.mxu0 %v458
    %1621 = vmatpush1.msra.mxu0 %v457
    %1622 = vmatprep.subr.mxu0 %v462
    %1623 = vmatpush1.msra.mxu0 %v461
    %1624 = vmatprep.subr.mxu0 %v466
    %1625 = vmatpush1.msra.mxu0 %v465
    %1626 = vmatprep.subr.mxu0 %v470
    %1627 = vmatpush1.msra.mxu0 %v469
    %1628 = vmatprep.subr.mxu0 %v474
    %1629 = vmatpush1.msra.mxu0 %v473
    %1630 = vmatprep.subr.mxu0 %v478
    %1631 = vmatpush1.msra.mxu0 %v477
    %1632 = vmatprep.subr.mxu0 0.0
    %1633 = vmatpush1.msra.mxu0 0.0
    %1634 = vmatprep.subr.mxu0 0.0
    %1635 = vmatpush1.msra.mxu0 0.0
    %1636 = vmatprep.subr.mxu0 0.0
    %1637 = vmatpush1.msra.mxu0 0.0
    %1638 = vmatprep.subr.mxu0 0.0
    %1639 = vmatpush1.msra.mxu0 0.0
    %1640 = vmatprep.subr.mxu0 0.0
    %1641 = vmatpush1.msra.mxu0 0.0
    %1642 = vmatprep.subr.mxu0 0.0
    %1643 = vmatpush1.msra.mxu0 0.0
    %1644 = vmatprep.subr.mxu0 0.0
    %1645 = vmatpush1.msra.mxu0 0.0
    %1646 = vmatprep.subr.mxu0 0.0
    %1647 = vmatpush1.msra.mxu0 0.0
    %1648 = vmatprep.subr.mxu0 0.0
    %1649 = vmatpush1.msra.mxu0 0.0
    %1650 = vmatprep.subr.mxu0 0.0
    %1651 = vmatpush1.msra.mxu0 0.0
    %1652 = vmatprep.subr.mxu0 0.0
    %1653 = vmatpush1.msra.mxu0 0.0
    %1654 = vmatprep.subr.mxu0 0.0
    %1655 = vmatpush1.msra.mxu0 0.0
    %1656 = vmatprep.subr.mxu0 0.0
    %1657 = vmatpush1.msra.mxu0 0.0
    %1658 = vmatprep.subr.mxu0 0.0
    %1659 = vmatpush1.msra.mxu0 0.0
    %1660 = vmatprep.subr.mxu0 0.0
    %1661 = vmatpush1.msra.mxu0 0.0
    %1662 = vmatprep.subr.mxu0 0.0
    %1663 = vmatpush1.msra.mxu0 0.0
    %1664 = vmatprep.mubr.f32.mxu0 0.0
    %1665 = vmatmul.mubr.f32.gmra.mrb[0].mxu0 %v1523
    %v1666 = vpop.f32.mrb[0].mxu0
    %v1667 = vadd.f32 0.0, %v1666
    %v1668 = vpop.f32.mrb[0].mxu0
    %v1669 = vadd.f32 0.0, %v1668
    %1670 = vdwg.mxu0
    %v1671 = vadd.f32 %v1525, %v1596
    %v1672 = vadd.f32 %v1526, %v1598
    %v1673 = vadd.f32 %v1527, %v1667
    %v1674 = vadd.f32 %v1528, %v1669
    %v1675 = vxor.u32 %v1671, 2147483648
    %v1676 = vmul.f32 %v1675, 1.442695
    %v1677 = vpow.pop %v1676
    %v1678 = vadd.f32 %v1677, 1.0
    %v1679 = vrcp.pop %v1678
    %v1680 = vmul.f32 1.0, %v1679
    %v1681 = vxor.u32 %v1672, 2147483648
    %v1682 = vmul.f32 %v1681, 1.442695
    %v1683 = vpow.pop %v1682
    %v1684 = vadd.f32 %v1683, 1.0
    %v1685 = vrcp.pop %v1684
    %v1686 = vmul.f32 1.0, %v1685
    %v1687 = vtanh.pop %v1673
    %v1688 = vxor.u32 %v1674, 2147483648
    %v1689 = vmul.f32 %v1688, 1.442695
    %v1690 = vpow.pop %v1689
    %v1691 = vadd.f32 %v1690, 1.0
    %v1692 = vrcp.pop %v1691
    %v1693 = vmul.f32 1.0, %v1692
    %v1694 = vmul.f32 %v1686, %v1521
    %v1695 = vmul.f32 %v1680, %v1687
    %v1696 = vadd.f32 %v1694, %v1695
    %v1697 = vtanh.pop %v1696
    %v1698 = vmul.f32 %v1693, %v1697
    %s1699 = scalar_lea.vmem [#allocation2], 224
    %v1700 = vld [vmem:[%s1699] sm:$0xff]
    %v1701 = vld [vmem:[%s1699 + $0x8] sm:$0xff]
    %v1702 = vld [vmem:[%s1699 + $0x10] sm:$0xff]
    %v1703 = vld [vmem:[%s1699 + $0x18] sm:$0xff]
    %1704 = vmatprep.subr.mxu0 %v416
    %1705 = vmatpush1.msra.mxu0 %v415
    %1706 = vmatprep.subr.mxu0 %v420
    %1707 = vmatpush1.msra.mxu0 %v419
    %1708 = vmatprep.subr.mxu0 %v424
    %1709 = vmatpush1.msra.mxu0 %v423
    %1710 = vmatprep.subr.mxu0 %v428
    %1711 = vmatpush1.msra.mxu0 %v427
    %1712 = vmatprep.subr.mxu0 %v432
    %1713 = vmatpush1.msra.mxu0 %v431
    %1714 = vmatprep.subr.mxu0 %v436
    %1715 = vmatpush1.msra.mxu0 %v435
    %1716 = vmatprep.subr.mxu0 %v440
    %1717 = vmatpush1.msra.mxu0 %v439
    %1718 = vmatprep.subr.mxu0 %v444
    %1719 = vmatpush1.msra.mxu0 %v443
    %1720 = vmatprep.subr.mxu0 %v448
    %1721 = vmatpush1.msra.mxu0 %v447
    %1722 = vmatprep.subr.mxu0 %v452
    %1723 = vmatpush1.msra.mxu0 %v451
    %1724 = vmatprep.subr.mxu0 %v456
    %1725 = vmatpush1.msra.mxu0 %v455
    %1726 = vmatprep.subr.mxu0 %v460
    %1727 = vmatpush1.msra.mxu0 %v459
    %1728 = vmatprep.subr.mxu0 %v464
    %1729 = vmatpush1.msra.mxu0 %v463
    %1730 = vmatprep.subr.mxu0 %v468
    %1731 = vmatpush1.msra.mxu0 %v467
    %1732 = vmatprep.subr.mxu0 %v472
    %1733 = vmatpush1.msra.mxu0 %v471
    %1734 = vmatprep.subr.mxu0 %v476
    %1735 = vmatpush1.msra.mxu0 %v475
    %1736 = vmatprep.subr.mxu0 0.0
    %1737 = vmatpush1.msra.mxu0 0.0
    %1738 = vmatprep.subr.mxu0 0.0
    %1739 = vmatpush1.msra.mxu0 0.0
    %1740 = vmatprep.subr.mxu0 0.0
    %1741 = vmatpush1.msra.mxu0 0.0
    %1742 = vmatprep.subr.mxu0 0.0
    %1743 = vmatpush1.msra.mxu0 0.0
    %1744 = vmatprep.subr.mxu0 0.0
    %1745 = vmatpush1.msra.mxu0 0.0
    %1746 = vmatprep.subr.mxu0 0.0
    %1747 = vmatpush1.msra.mxu0 0.0
    %1748 = vmatprep.subr.mxu0 0.0
    %1749 = vmatpush1.msra.mxu0 0.0
    %1750 = vmatprep.subr.mxu0 0.0
    %1751 = vmatpush1.msra.mxu0 0.0
    %1752 = vmatprep.subr.mxu0 0.0
    %1753 = vmatpush1.msra.mxu0 0.0
    %1754 = vmatprep.subr.mxu0 0.0
    %1755 = vmatpush1.msra.mxu0 0.0
    %1756 = vmatprep.subr.mxu0 0.0
    %1757 = vmatpush1.msra.mxu0 0.0
    %1758 = vmatprep.subr.mxu0 0.0
    %1759 = vmatpush1.msra.mxu0 0.0
    %1760 = vmatprep.subr.mxu0 0.0
    %1761 = vmatpush1.msra.mxu0 0.0
    %1762 = vmatprep.subr.mxu0 0.0
    %1763 = vmatpush1.msra.mxu0 0.0
    %1764 = vmatprep.subr.mxu0 0.0
    %1765 = vmatpush1.msra.mxu0 0.0
    %1766 = vmatprep.subr.mxu0 0.0
    %1767 = vmatpush1.msra.mxu0 0.0
    %1768 = vmatprep.mubr.f32.mxu0 0.0
    %1769 = vmatmul.mubr.f32.gmra.mrb[0].mxu0 %v1698
    %v1770 = vpop.f32.mrb[0].mxu0
    %v1771 = vadd.f32 0.0, %v1770
    %v1772 = vpop.f32.mrb[0].mxu0
    %v1773 = vadd.f32 0.0, %v1772
    %1774 = vdwg.mxu0
    %1775 = vmatprep.subr.mxu0 %v418
    %1776 = vmatpush1.msra.mxu0 %v417
    %1777 = vmatprep.subr.mxu0 %v422
    %1778 = vmatpush1.msra.mxu0 %v421
    %1779 = vmatprep.subr.mxu0 %v426
    %1780 = vmatpush1.msra.mxu0 %v425
    %1781 = vmatprep.subr.mxu0 %v430
    %1782 = vmatpush1.msra.mxu0 %v429
    %1783 = vmatprep.subr.mxu0 %v434
    %1784 = vmatpush1.msra.mxu0 %v433
    %1785 = vmatprep.subr.mxu0 %v438
    %1786 = vmatpush1.msra.mxu0 %v437
    %1787 = vmatprep.subr.mxu0 %v442
    %1788 = vmatpush1.msra.mxu0 %v441
    %1789 = vmatprep.subr.mxu0 %v446
    %1790 = vmatpush1.msra.mxu0 %v445
    %1791 = vmatprep.subr.mxu0 %v450
    %1792 = vmatpush1.msra.mxu0 %v449
    %1793 = vmatprep.subr.mxu0 %v454
    %1794 = vmatpush1.msra.mxu0 %v453
    %1795 = vmatprep.subr.mxu0 %v458
    %1796 = vmatpush1.msra.mxu0 %v457
    %1797 = vmatprep.subr.mxu0 %v462
    %1798 = vmatpush1.msra.mxu0 %v461
    %1799 = vmatprep.subr.mxu0 %v466
    %1800 = vmatpush1.msra.mxu0 %v465
    %1801 = vmatprep.subr.mxu0 %v470
    %1802 = vmatpush1.msra.mxu0 %v469
    %1803 = vmatprep.subr.mxu0 %v474
    %1804 = vmatpush1.msra.mxu0 %v473
    %1805 = vmatprep.subr.mxu0 %v478
    %1806 = vmatpush1.msra.mxu0 %v477
    %1807 = vmatprep.subr.mxu0 0.0
    %1808 = vmatpush1.msra.mxu0 0.0
    %1809 = vmatprep.subr.mxu0 0.0
    %1810 = vmatpush1.msra.mxu0 0.0
    %1811 = vmatprep.subr.mxu0 0.0
    %1812 = vmatpush1.msra.mxu0 0.0
    %1813 = vmatprep.subr.mxu0 0.0
    %1814 = vmatpush1.msra.mxu0 0.0
    %1815 = vmatprep.subr.mxu0 0.0
    %1816 = vmatpush1.msra.mxu0 0.0
    %1817 = vmatprep.subr.mxu0 0.0
    %1818 = vmatpush1.msra.mxu0 0.0
    %1819 = vmatprep.subr.mxu0 0.0
    %1820 = vmatpush1.msra.mxu0 0.0
    %1821 = vmatprep.subr.mxu0 0.0
    %1822 = vmatpush1.msra.mxu0 0.0
    %1823 = vmatprep.subr.mxu0 0.0
    %1824 = vmatpush1.msra.mxu0 0.0
    %1825 = vmatprep.subr.mxu0 0.0
    %1826 = vmatpush1.msra.mxu0 0.0
    %1827 = vmatprep.subr.mxu0 0.0
    %1828 = vmatpush1.msra.mxu0 0.0
    %1829 = vmatprep.subr.mxu0 0.0
    %1830 = vmatpush1.msra.mxu0 0.0
    %1831 = vmatprep.subr.mxu0 0.0
    %1832 = vmatpush1.msra.mxu0 0.0
    %1833 = vmatprep.subr.mxu0 0.0
    %1834 = vmatpush1.msra.mxu0 0.0
    %1835 = vmatprep.subr.mxu0 0.0
    %1836 = vmatpush1.msra.mxu0 0.0
    %1837 = vmatprep.subr.mxu0 0.0
    %1838 = vmatpush1.msra.mxu0 0.0
    %1839 = vmatprep.mubr.f32.mxu0 0.0
    %1840 = vmatmul.mubr.f32.gmra.mrb[0].mxu0 %v1698
    %v1841 = vpop.f32.mrb[0].mxu0
    %v1842 = vadd.f32 0.0, %v1841
    %v1843 = vpop.f32.mrb[0].mxu0
    %v1844 = vadd.f32 0.0, %v1843
    %1845 = vdwg.mxu0
    %v1846 = vadd.f32 %v1700, %v1771
    %v1847 = vadd.f32 %v1701, %v1773
    %v1848 = vadd.f32 %v1702, %v1842
    %v1849 = vadd.f32 %v1703, %v1844
    %v1850 = vxor.u32 %v1846, 2147483648
    %v1851 = vmul.f32 %v1850, 1.442695
    %v1852 = vpow.pop %v1851
    %v1853 = vadd.f32 %v1852, 1.0
    %v1854 = vrcp.pop %v1853
    %v1855 = vmul.f32 1.0, %v1854
    %v1856 = vxor.u32 %v1847, 2147483648
    %v1857 = vmul.f32 %v1856, 1.442695
    %v1858 = vpow.pop %v1857
    %v1859 = vadd.f32 %v1858, 1.0
    %v1860 = vrcp.pop %v1859
    %v1861 = vmul.f32 1.0, %v1860
    %v1862 = vtanh.pop %v1848
    %v1863 = vxor.u32 %v1849, 2147483648
    %v1864 = vmul.f32 %v1863, 1.442695
    %v1865 = vpow.pop %v1864
    %v1866 = vadd.f32 %v1865, 1.0
    %v1867 = vrcp.pop %v1866
    %v1868 = vmul.f32 1.0, %v1867
    %v1869 = vmul.f32 %v1861, %v1696
    %v1870 = vmul.f32 %v1855, %v1862
    %v1871 = vadd.f32 %v1869, %v1870
    %v1872 = vtanh.pop %v1871
    %v1873 = vmul.f32 %v1868, %v1872
    %1874 = vst [vmem:[#allocation9] sm:$0xff] %v1873
    // Predicated region
    $region30: #{tpu_custom_call.1} parent=1 // pred_check
      _
    $region31: #{tpu_custom_call.1} parent=1 // pred_check_branch
      %1876 = sbr.rel (0) target = $region33
    $region32: #{tpu_custom_call.1} parent=1 // pred_region
      %s1878 = ssub.s32 128, 128
      %1879 = vsyncadd [#allocation5], %s1878
      %s1881 = sshll.u32 [#allocation9], 4
      %s1882 = int_to_ptr.vmem [resolvable:$true] %s1881
      %1884 = dma.vmem_to_hbm [thread:$0]  %s1882, 128, %s4, [#allocation5]
    $region33: #{tpu_custom_call.1} parent=1 // pred_fallthru
      _
    // Predicated region
    $region34: #{tpu_custom_call.1} parent=1 // pred_check
      _
    $region35: #{tpu_custom_call.1} parent=1 // pred_check_branch
      %1886 = sbr.rel (0) target = $region37
    $region36: #{tpu_custom_call.1} parent=1 // pred_region
      %1887 = dma.done [#allocation5], 128
    $region37: #{tpu_custom_call.1} parent=1 // pred_fallthru
      _
    %1888 = vsyncpa [#allocation4], 1
    %1889 = vsyncpa [#allocation7], 1
    %1890 = vsyncpa [#allocation5], 1

</llo_original>
